<compile_context>
chip_gen: v6e
topology: v6e:2x2x1
jax: 0.10.0
libtpu: 0.0.40
codegen_flags: <defaults>
</compile_context>

<pallas_src>
import functools

import jax
import jax.numpy as jnp
from jax.experimental import pallas as pl
from jax.experimental.pallas import tpu as pltpu


# ------------------------------ fused kernel ------------------------------- #

def _simclr_fused_kernel(*refs, num_gc_layers, hidden_dim):
    """Entire SimCLR forward: GIN encoder (+ per-layer global_add_pool) and proj head.

    Ref order: x, adj, pool, (w1, b1, w2, b2) * L, pw1, pb1, pw2, pb2, out.
    """
    x_ref, adj_ref, pool_ref = refs[0], refs[1], refs[2]
    idx = 3
    gin = []
    for _ in range(num_gc_layers):
        gin.append(refs[idx:idx + 4])
        idx += 4
    pw1_ref, pb1_ref, pw2_ref, pb2_ref = refs[idx:idx + 4]
    o_ref = refs[idx + 4]

    H = hidden_dim
    G = pool_ref.shape[0]
    E = pw1_ref.shape[1]

    adj = adj_ref[...]          # (N, N) bf16, WITHOUT self-loops
    pool = pool_ref[...]        # (G, N) bf16
    h = x_ref[...]              # (N, F) f32 activations

    # Accumulator for the projection head's first linear, built up layer by layer:
    #   concat(pooled_0 .. pooled_{L-1}) @ PW1 == sum_l pooled_l @ PW1[l*H:(l+1)*H, :]
    y = jnp.zeros((G, E), jnp.float32)

    for l in range(num_gc_layers):
        w1_ref, b1_ref, w2_ref, b2_ref = gin[l]

        # GIN aggregation with the self-loop folded in: (A + I) @ h == A @ h + h.
        agg = jnp.dot(adj, h.astype(jnp.bfloat16),
                      preferred_element_type=jnp.float32) + h

        # MLP linear1 + ReLU (f32 epilogue on all generations).
        h = jnp.dot(agg.astype(jnp.bfloat16), w1_ref[...],
                    preferred_element_type=jnp.float32) + b1_ref[...]
        h = jnp.maximum(h, 0.0)

        # MLP linear2 + outer F.relu(conv(...)).
        h = jnp.dot(h.astype(jnp.bfloat16), w2_ref[...],
                    preferred_element_type=jnp.float32) + b2_ref[...]
        h = jnp.maximum(h, 0.0)

        # global_add_pool for this layer, fed straight into the matching row-block
        # of the projection head's first linear (no lane-32 concat, no HBM trip).
        pooled = jnp.dot(pool, h.astype(jnp.bfloat16),
                         preferred_element_type=jnp.float32)          # (G, H)
        y = y + jnp.dot(pooled.astype(jnp.bfloat16),
                        pw1_ref[l * H:(l + 1) * H, :],
                        preferred_element_type=jnp.float32)

    # Projection head epilogue: bias + ReLU, then second linear (lane-dense (G, E) store).
    y = jnp.maximum(y + pb1_ref[...], 0.0)
    y = jnp.dot(y.astype(jnp.bfloat16), pw2_ref[...],
                preferred_element_type=jnp.float32) + pb2_ref[...]
    o_ref[...] = y.astype(o_ref.dtype)


# --------------------------- parameter init (glue) -------------------------- #

def _xavier_uniform(key, fan_in, fan_out):
    # matches torch.nn.init.xavier_uniform_ (bound = sqrt(6/(fan_in+fan_out)))
    bound = (6.0 / (fan_in + fan_out)) ** 0.5
    w = jax.random.uniform(key, (fan_in, fan_out), jnp.float32, -bound, bound)
    return w.astype(jnp.bfloat16)   # bf16 weights for the MXU; f32 accumulation in-kernel


def init_params(key, num_features, hidden_dim, num_gc_layers):
    embedding_dim = hidden_dim * num_gc_layers
    params = {"gin": [], "proj": {}}
    for layer in range(num_gc_layers):
        in_dim = num_features if layer == 0 else hidden_dim
        key, k1, k2 = jax.random.split(key, 3)
        params["gin"].append(
            {
                "w1": _xavier_uniform(k1, in_dim, hidden_dim),
                "b1": jnp.zeros((1, hidden_dim), jnp.float32),
                "w2": _xavier_uniform(k2, hidden_dim, hidden_dim),
                "b2": jnp.zeros((1, hidden_dim), jnp.float32),
            }
        )
    key, k1, k2 = jax.random.split(key, 3)
    params["proj"] = {
        "w1": _xavier_uniform(k1, embedding_dim, embedding_dim),
        "b1": jnp.zeros((1, embedding_dim), jnp.float32),
        "w2": _xavier_uniform(k2, embedding_dim, embedding_dim),
        "b2": jnp.zeros((1, embedding_dim), jnp.float32),
    }
    return params


# ------------------------------- forward pass ------------------------------ #

def _full_spec(arr):
    # every operand here is 2-D and small enough to live as a single VMEM block
    return pl.BlockSpec(arr.shape, lambda i: (0, 0))


def simclr_forward(params, x, adj, pool_mat):
    """x:(N,F) node features, adj:(N,N) dense adjacency (no self loops), pool_mat:(G,N)."""
    N, F_in = x.shape
    G = pool_mat.shape[0]
    gin = params["gin"]
    L = len(gin)
    H = gin[0]["w1"].shape[1]
    E = H * L

    inputs = [x.astype(jnp.float32),
              adj.astype(jnp.bfloat16),        # 0/1/2-valued -> exact in bf16
              pool_mat.astype(jnp.bfloat16)]   # 0/1-valued   -> exact in bf16
    for lp in gin:
        inputs += [lp["w1"], lp["b1"], lp["w2"], lp["b2"]]
    pj = params["proj"]
    inputs += [pj["w1"], pj["b1"], pj["w2"], pj["b2"]]

    # advisory cost estimate so XLA can schedule around the fused custom call
    flops = 0
    d = F_in
    for _ in range(L):
        flops += 2 * N * N * d        # (A @ h) aggregation
        flops += 2 * N * d * H        # MLP linear1
        flops += 2 * N * H * H        # MLP linear2
        flops += 2 * G * N * H        # global_add_pool
        flops += 2 * G * H * E        # proj-head row block
        d = H
    flops += 2 * G * E * E            # proj-head second linear
    bytes_accessed = sum(int(a.size) * a.dtype.itemsize for a in inputs) + G * E * 4
    cost = pl.CostEstimate(flops=flops, transcendentals=0,
                           bytes_accessed=bytes_accessed)

    kernel = functools.partial(_simclr_fused_kernel,
                               num_gc_layers=L, hidden_dim=H)
    return pl.pallas_call(
        kernel,
        out_shape=jax.ShapeDtypeStruct((G, E), jnp.float32),
        grid=(1,),
        in_specs=[_full_spec(a) for a in inputs],
        out_specs=pl.BlockSpec((G, E), lambda i: (0, 0)),
        compiler_params=pltpu.CompilerParams(
            dimension_semantics=("arbitrary",),
            vmem_limit_bytes=32 * 1024 * 1024,
        ),
        cost_estimate=cost,
    )(*inputs)


# ---------------------------------- main ----------------------------------- #

if __name__ == "__main__":
    num_nodes, num_features = 16, 4
    hidden_dim, num_gc_layers = 32, 3
    num_graphs = 2

    key = jax.random.PRNGKey(0)
    kx, ke1, ke2, kp = jax.random.split(key, 4)

    # node features
    x = jax.random.normal(kx, (num_nodes, num_features), jnp.float32)

    # edge_index: ring + random chords, both directions (2, 56)
    src = jnp.arange(num_nodes, dtype=jnp.int32)
    dst = (src + 1) % num_nodes
    extra_src = jax.random.randint(ke1, (12,), 0, num_nodes, dtype=jnp.int32)
    extra_dst = jax.random.randint(ke2, (12,), 0, num_nodes, dtype=jnp.int32)
    edge_index = jnp.stack(
        [
            jnp.concatenate([src, dst, extra_src, extra_dst]),
            jnp.concatenate([dst, src, extra_dst, extra_src]),
        ]
    )

    # batch assignment: first 8 nodes -> graph 0, last 8 -> graph 1
    batch = jnp.concatenate(
        [jnp.zeros(8, jnp.int32), jnp.ones(8, jnp.int32)]
    )

    # glue: dense adjacency (scatter-add, matching GIN sum aggregation) and pooling matrix.
    # NOTE: no +I here — the self-loop is folded into the kernel (A @ h + h).
    adj = jnp.zeros((num_nodes, num_nodes), jnp.float32).at[
        edge_index[0], edge_index[1]
    ].add(1.0)
    pool_mat = (batch[None, :] == jnp.arange(num_graphs)[:, None]).astype(jnp.float32)

    params = init_params(kp, num_features, hidden_dim, num_gc_layers)

    y = jax.jit(simclr_forward)(params, x, adj, pool_mat)
    y = jax.block_until_ready(y)
    assert y.shape == (num_graphs, hidden_dim * num_gc_layers)
    assert jnp.all(jnp.isfinite(y))
    print("KERNEL_OK")
</pallas_src>

<mosaic_0001>
module attributes {stable_mosaic.version = 11 : i64} {
  func.func @_simclr_fused_kernel(%arg0: i32, %arg1: memref<16x4xf32, #tpu.memory_space<vmem>>, %arg2: memref<16x16xbf16, #tpu.memory_space<vmem>>, %arg3: memref<2x16xbf16, #tpu.memory_space<vmem>>, %arg4: memref<4x32xbf16, #tpu.memory_space<vmem>>, %arg5: memref<1x32xf32, #tpu.memory_space<vmem>>, %arg6: memref<32x32xbf16, #tpu.memory_space<vmem>>, %arg7: memref<1x32xf32, #tpu.memory_space<vmem>>, %arg8: memref<32x32xbf16, #tpu.memory_space<vmem>>, %arg9: memref<1x32xf32, #tpu.memory_space<vmem>>, %arg10: memref<32x32xbf16, #tpu.memory_space<vmem>>, %arg11: memref<1x32xf32, #tpu.memory_space<vmem>>, %arg12: memref<32x32xbf16, #tpu.memory_space<vmem>>, %arg13: memref<1x32xf32, #tpu.memory_space<vmem>>, %arg14: memref<32x32xbf16, #tpu.memory_space<vmem>>, %arg15: memref<1x32xf32, #tpu.memory_space<vmem>>, %arg16: memref<96x96xbf16, #tpu.memory_space<vmem>>, %arg17: memref<1x96xf32, #tpu.memory_space<vmem>>, %arg18: memref<96x96xbf16, #tpu.memory_space<vmem>>, %arg19: memref<1x96xf32, #tpu.memory_space<vmem>>, %arg20: memref<2x96xf32, #tpu.memory_space<vmem>>) attributes {dimension_semantics = [#tpu.dimension_semantics<arbitrary>], iteration_bounds = array<i64: 1>, scalar_prefetch = 0 : i64, scratch_operands = 0 : i64, tpu.core_type = #tpu.core_type<tc>, window_params = [{pipeline_mode = #tpu.pipeline_mode<synchronous>, transform_indices = @transform_0, window_bounds = array<i64: 16, 4>}, {pipeline_mode = #tpu.pipeline_mode<synchronous>, transform_indices = @transform_1, window_bounds = array<i64: 16, 16>}, {pipeline_mode = #tpu.pipeline_mode<synchronous>, transform_indices = @transform_2, window_bounds = array<i64: 2, 16>}, {pipeline_mode = #tpu.pipeline_mode<synchronous>, transform_indices = @transform_3, window_bounds = array<i64: 4, 32>}, {pipeline_mode = #tpu.pipeline_mode<synchronous>, transform_indices = @transform_4, window_bounds = array<i64: 1, 32>}, {pipeline_mode = #tpu.pipeline_mode<synchronous>, transform_indices = @transform_5, window_bounds = array<i64: 32, 32>}, {pipeline_mode = #tpu.pipeline_mode<synchronous>, transform_indices = @transform_6, window_bounds = array<i64: 1, 32>}, {pipeline_mode = #tpu.pipeline_mode<synchronous>, transform_indices = @transform_7, window_bounds = array<i64: 32, 32>}, {pipeline_mode = #tpu.pipeline_mode<synchronous>, transform_indices = @transform_8, window_bounds = array<i64: 1, 32>}, {pipeline_mode = #tpu.pipeline_mode<synchronous>, transform_indices = @transform_9, window_bounds = array<i64: 32, 32>}, {pipeline_mode = #tpu.pipeline_mode<synchronous>, transform_indices = @transform_10, window_bounds = array<i64: 1, 32>}, {pipeline_mode = #tpu.pipeline_mode<synchronous>, transform_indices = @transform_11, window_bounds = array<i64: 32, 32>}, {pipeline_mode = #tpu.pipeline_mode<synchronous>, transform_indices = @transform_12, window_bounds = array<i64: 1, 32>}, {pipeline_mode = #tpu.pipeline_mode<synchronous>, transform_indices = @transform_13, window_bounds = array<i64: 32, 32>}, {pipeline_mode = #tpu.pipeline_mode<synchronous>, transform_indices = @transform_14, window_bounds = array<i64: 1, 32>}, {pipeline_mode = #tpu.pipeline_mode<synchronous>, transform_indices = @transform_15, window_bounds = array<i64: 96, 96>}, {pipeline_mode = #tpu.pipeline_mode<synchronous>, transform_indices = @transform_16, window_bounds = array<i64: 1, 96>}, {pipeline_mode = #tpu.pipeline_mode<synchronous>, transform_indices = @transform_17, window_bounds = array<i64: 96, 96>}, {pipeline_mode = #tpu.pipeline_mode<synchronous>, transform_indices = @transform_18, window_bounds = array<i64: 1, 96>}, {pipeline_mode = #tpu.pipeline_mode<synchronous>, transform_indices = @transform_19, window_bounds = array<i64: 2, 96>}]} {
    %c0 = arith.constant 0 : index
    %c0_0 = arith.constant 0 : index
    %0 = vector.load %arg2[%c0, %c0_0] : memref<16x16xbf16, #tpu.memory_space<vmem>>, vector<16x16xbf16>
    %c0_1 = arith.constant 0 : index
    %c0_2 = arith.constant 0 : index
    %1 = vector.load %arg3[%c0_1, %c0_2] : memref<2x16xbf16, #tpu.memory_space<vmem>>, vector<2x16xbf16>
    %c0_3 = arith.constant 0 : index
    %c0_4 = arith.constant 0 : index
    %2 = vector.load %arg1[%c0_3, %c0_4] : memref<16x4xf32, #tpu.memory_space<vmem>>, vector<16x4xf32>
    %cst = arith.constant 0.000000e+00 : f32
    %3 = vector.broadcast %cst : f32 to vector<2x96xf32>
    %4 = arith.truncf %2 : vector<16x4xf32> to vector<16x4xbf16>
    %cst_5 = arith.constant dense<0.000000e+00> : vector<16x4xf32>
    %5 = tpu.matmul %0, %4, %cst_5 {dimension_numbers = #tpu.dot_dimension_numbers<[1], [0], [0], [1], [0, 0, 1, 1], [], []>} : vector<16x16xbf16>, vector<16x4xbf16>, vector<16x4xf32> -> vector<16x4xf32>
    %6 = arith.addf %5, %2 : vector<16x4xf32>
    %7 = arith.truncf %6 : vector<16x4xf32> to vector<16x4xbf16>
    %c0_6 = arith.constant 0 : index
    %c0_7 = arith.constant 0 : index
    %8 = vector.load %arg4[%c0_6, %c0_7] : memref<4x32xbf16, #tpu.memory_space<vmem>>, vector<4x32xbf16>
    %cst_8 = arith.constant dense<0.000000e+00> : vector<16x32xf32>
    %9 = tpu.matmul %7, %8, %cst_8 {dimension_numbers = #tpu.dot_dimension_numbers<[1], [0], [0], [1], [0, 0, 1, 1], [], []>} : vector<16x4xbf16>, vector<4x32xbf16>, vector<16x32xf32> -> vector<16x32xf32>
    %c0_9 = arith.constant 0 : index
    %c0_10 = arith.constant 0 : index
    %10 = vector.load %arg5[%c0_9, %c0_10] : memref<1x32xf32, #tpu.memory_space<vmem>>, vector<1x32xf32>
    %11 = vector.broadcast %10 : vector<1x32xf32> to vector<16x32xf32>
    %12 = arith.addf %9, %11 : vector<16x32xf32>
    %cst_11 = arith.constant 0.000000e+00 : f32
    %13 = vector.broadcast %cst_11 : f32 to vector<16x32xf32>
    %14 = arith.maximumf %12, %13 : vector<16x32xf32>
    %15 = arith.truncf %14 : vector<16x32xf32> to vector<16x32xbf16>
    %c0_12 = arith.constant 0 : index
    %c0_13 = arith.constant 0 : index
    %16 = vector.load %arg6[%c0_12, %c0_13] : memref<32x32xbf16, #tpu.memory_space<vmem>>, vector<32x32xbf16>
    %cst_14 = arith.constant dense<0.000000e+00> : vector<16x32xf32>
    %17 = tpu.matmul %15, %16, %cst_14 {dimension_numbers = #tpu.dot_dimension_numbers<[1], [0], [0], [1], [0, 0, 1, 1], [], []>} : vector<16x32xbf16>, vector<32x32xbf16>, vector<16x32xf32> -> vector<16x32xf32>
    %c0_15 = arith.constant 0 : index
    %c0_16 = arith.constant 0 : index
    %18 = vector.load %arg7[%c0_15, %c0_16] : memref<1x32xf32, #tpu.memory_space<vmem>>, vector<1x32xf32>
    %19 = vector.broadcast %18 : vector<1x32xf32> to vector<16x32xf32>
    %20 = arith.addf %17, %19 : vector<16x32xf32>
    %cst_17 = arith.constant 0.000000e+00 : f32
    %21 = vector.broadcast %cst_17 : f32 to vector<16x32xf32>
    %22 = arith.maximumf %20, %21 : vector<16x32xf32>
    %23 = arith.truncf %22 : vector<16x32xf32> to vector<16x32xbf16>
    %cst_18 = arith.constant dense<0.000000e+00> : vector<2x32xf32>
    %24 = tpu.matmul %1, %23, %cst_18 {dimension_numbers = #tpu.dot_dimension_numbers<[1], [0], [0], [1], [0, 0, 1, 1], [], []>} : vector<2x16xbf16>, vector<16x32xbf16>, vector<2x32xf32> -> vector<2x32xf32>
    %25 = arith.truncf %24 : vector<2x32xf32> to vector<2x32xbf16>
    %c0_19 = arith.constant 0 : index
    %c0_20 = arith.constant 0 : index
    %26 = vector.load %arg16[%c0_19, %c0_20] : memref<96x96xbf16, #tpu.memory_space<vmem>>, vector<32x96xbf16>
    %cst_21 = arith.constant dense<0.000000e+00> : vector<2x96xf32>
    %27 = tpu.matmul %25, %26, %cst_21 {dimension_numbers = #tpu.dot_dimension_numbers<[1], [0], [0], [1], [0, 0, 1, 1], [], []>} : vector<2x32xbf16>, vector<32x96xbf16>, vector<2x96xf32> -> vector<2x96xf32>
    %28 = arith.addf %3, %27 : vector<2x96xf32>
    %29 = arith.truncf %22 : vector<16x32xf32> to vector<16x32xbf16>
    %cst_22 = arith.constant dense<0.000000e+00> : vector<16x32xf32>
    %30 = tpu.matmul %0, %29, %cst_22 {dimension_numbers = #tpu.dot_dimension_numbers<[1], [0], [0], [1], [0, 0, 1, 1], [], []>} : vector<16x16xbf16>, vector<16x32xbf16>, vector<16x32xf32> -> vector<16x32xf32>
    %31 = arith.addf %30, %22 : vector<16x32xf32>
    %32 = arith.truncf %31 : vector<16x32xf32> to vector<16x32xbf16>
    %c0_23 = arith.constant 0 : index
    %c0_24 = arith.constant 0 : index
    %33 = vector.load %arg8[%c0_23, %c0_24] : memref<32x32xbf16, #tpu.memory_space<vmem>>, vector<32x32xbf16>
    %cst_25 = arith.constant dense<0.000000e+00> : vector<16x32xf32>
    %34 = tpu.matmul %32, %33, %cst_25 {dimension_numbers = #tpu.dot_dimension_numbers<[1], [0], [0], [1], [0, 0, 1, 1], [], []>} : vector<16x32xbf16>, vector<32x32xbf16>, vector<16x32xf32> -> vector<16x32xf32>
    %c0_26 = arith.constant 0 : index
    %c0_27 = arith.constant 0 : index
    %35 = vector.load %arg9[%c0_26, %c0_27] : memref<1x32xf32, #tpu.memory_space<vmem>>, vector<1x32xf32>
    %36 = vector.broadcast %35 : vector<1x32xf32> to vector<16x32xf32>
    %37 = arith.addf %34, %36 : vector<16x32xf32>
    %cst_28 = arith.constant 0.000000e+00 : f32
    %38 = vector.broadcast %cst_28 : f32 to vector<16x32xf32>
    %39 = arith.maximumf %37, %38 : vector<16x32xf32>
    %40 = arith.truncf %39 : vector<16x32xf32> to vector<16x32xbf16>
    %c0_29 = arith.constant 0 : index
    %c0_30 = arith.constant 0 : index
    %41 = vector.load %arg10[%c0_29, %c0_30] : memref<32x32xbf16, #tpu.memory_space<vmem>>, vector<32x32xbf16>
    %cst_31 = arith.constant dense<0.000000e+00> : vector<16x32xf32>
    %42 = tpu.matmul %40, %41, %cst_31 {dimension_numbers = #tpu.dot_dimension_numbers<[1], [0], [0], [1], [0, 0, 1, 1], [], []>} : vector<16x32xbf16>, vector<32x32xbf16>, vector<16x32xf32> -> vector<16x32xf32>
    %c0_32 = arith.constant 0 : index
    %c0_33 = arith.constant 0 : index
    %43 = vector.load %arg11[%c0_32, %c0_33] : memref<1x32xf32, #tpu.memory_space<vmem>>, vector<1x32xf32>
    %44 = vector.broadcast %43 : vector<1x32xf32> to vector<16x32xf32>
    %45 = arith.addf %42, %44 : vector<16x32xf32>
    %cst_34 = arith.constant 0.000000e+00 : f32
    %46 = vector.broadcast %cst_34 : f32 to vector<16x32xf32>
    %47 = arith.maximumf %45, %46 : vector<16x32xf32>
    %48 = arith.truncf %47 : vector<16x32xf32> to vector<16x32xbf16>
    %cst_35 = arith.constant dense<0.000000e+00> : vector<2x32xf32>
    %49 = tpu.matmul %1, %48, %cst_35 {dimension_numbers = #tpu.dot_dimension_numbers<[1], [0], [0], [1], [0, 0, 1, 1], [], []>} : vector<2x16xbf16>, vector<16x32xbf16>, vector<2x32xf32> -> vector<2x32xf32>
    %50 = arith.truncf %49 : vector<2x32xf32> to vector<2x32xbf16>
    %c32 = arith.constant 32 : index
    %c0_36 = arith.constant 0 : index
    %51 = vector.load %arg16[%c32, %c0_36] : memref<96x96xbf16, #tpu.memory_space<vmem>>, vector<32x96xbf16>
    %cst_37 = arith.constant dense<0.000000e+00> : vector<2x96xf32>
    %52 = tpu.matmul %50, %51, %cst_37 {dimension_numbers = #tpu.dot_dimension_numbers<[1], [0], [0], [1], [0, 0, 1, 1], [], []>} : vector<2x32xbf16>, vector<32x96xbf16>, vector<2x96xf32> -> vector<2x96xf32>
    %53 = arith.addf %28, %52 : vector<2x96xf32>
    %54 = arith.truncf %47 : vector<16x32xf32> to vector<16x32xbf16>
    %cst_38 = arith.constant dense<0.000000e+00> : vector<16x32xf32>
    %55 = tpu.matmul %0, %54, %cst_38 {dimension_numbers = #tpu.dot_dimension_numbers<[1], [0], [0], [1], [0, 0, 1, 1], [], []>} : vector<16x16xbf16>, vector<16x32xbf16>, vector<16x32xf32> -> vector<16x32xf32>
    %56 = arith.addf %55, %47 : vector<16x32xf32>
    %57 = arith.truncf %56 : vector<16x32xf32> to vector<16x32xbf16>
    %c0_39 = arith.constant 0 : index
    %c0_40 = arith.constant 0 : index
    %58 = vector.load %arg12[%c0_39, %c0_40] : memref<32x32xbf16, #tpu.memory_space<vmem>>, vector<32x32xbf16>
    %cst_41 = arith.constant dense<0.000000e+00> : vector<16x32xf32>
    %59 = tpu.matmul %57, %58, %cst_41 {dimension_numbers = #tpu.dot_dimension_numbers<[1], [0], [0], [1], [0, 0, 1, 1], [], []>} : vector<16x32xbf16>, vector<32x32xbf16>, vector<16x32xf32> -> vector<16x32xf32>
    %c0_42 = arith.constant 0 : index
    %c0_43 = arith.constant 0 : index
    %60 = vector.load %arg13[%c0_42, %c0_43] : memref<1x32xf32, #tpu.memory_space<vmem>>, vector<1x32xf32>
    %61 = vector.broadcast %60 : vector<1x32xf32> to vector<16x32xf32>
    %62 = arith.addf %59, %61 : vector<16x32xf32>
    %cst_44 = arith.constant 0.000000e+00 : f32
    %63 = vector.broadcast %cst_44 : f32 to vector<16x32xf32>
    %64 = arith.maximumf %62, %63 : vector<16x32xf32>
    %65 = arith.truncf %64 : vector<16x32xf32> to vector<16x32xbf16>
    %c0_45 = arith.constant 0 : index
    %c0_46 = arith.constant 0 : index
    %66 = vector.load %arg14[%c0_45, %c0_46] : memref<32x32xbf16, #tpu.memory_space<vmem>>, vector<32x32xbf16>
    %cst_47 = arith.constant dense<0.000000e+00> : vector<16x32xf32>
    %67 = tpu.matmul %65, %66, %cst_47 {dimension_numbers = #tpu.dot_dimension_numbers<[1], [0], [0], [1], [0, 0, 1, 1], [], []>} : vector<16x32xbf16>, vector<32x32xbf16>, vector<16x32xf32> -> vector<16x32xf32>
    %c0_48 = arith.constant 0 : index
    %c0_49 = arith.constant 0 : index
    %68 = vector.load %arg15[%c0_48, %c0_49] : memref<1x32xf32, #tpu.memory_space<vmem>>, vector<1x32xf32>
    %69 = vector.broadcast %68 : vector<1x32xf32> to vector<16x32xf32>
    %70 = arith.addf %67, %69 : vector<16x32xf32>
    %cst_50 = arith.constant 0.000000e+00 : f32
    %71 = vector.broadcast %cst_50 : f32 to vector<16x32xf32>
    %72 = arith.maximumf %70, %71 : vector<16x32xf32>
    %73 = arith.truncf %72 : vector<16x32xf32> to vector<16x32xbf16>
    %cst_51 = arith.constant dense<0.000000e+00> : vector<2x32xf32>
    %74 = tpu.matmul %1, %73, %cst_51 {dimension_numbers = #tpu.dot_dimension_numbers<[1], [0], [0], [1], [0, 0, 1, 1], [], []>} : vector<2x16xbf16>, vector<16x32xbf16>, vector<2x32xf32> -> vector<2x32xf32>
    %75 = arith.truncf %74 : vector<2x32xf32> to vector<2x32xbf16>
    %c64 = arith.constant 64 : index
    %c0_52 = arith.constant 0 : index
    %76 = vector.load %arg16[%c64, %c0_52] : memref<96x96xbf16, #tpu.memory_space<vmem>>, vector<32x96xbf16>
    %cst_53 = arith.constant dense<0.000000e+00> : vector<2x96xf32>
    %77 = tpu.matmul %75, %76, %cst_53 {dimension_numbers = #tpu.dot_dimension_numbers<[1], [0], [0], [1], [0, 0, 1, 1], [], []>} : vector<2x32xbf16>, vector<32x96xbf16>, vector<2x96xf32> -> vector<2x96xf32>
    %78 = arith.addf %53, %77 : vector<2x96xf32>
    %c0_54 = arith.constant 0 : index
    %c0_55 = arith.constant 0 : index
    %79 = vector.load %arg17[%c0_54, %c0_55] : memref<1x96xf32, #tpu.memory_space<vmem>>, vector<1x96xf32>
    %80 = vector.broadcast %79 : vector<1x96xf32> to vector<2x96xf32>
    %81 = arith.addf %78, %80 : vector<2x96xf32>
    %cst_56 = arith.constant 0.000000e+00 : f32
    %82 = vector.broadcast %cst_56 : f32 to vector<2x96xf32>
    %83 = arith.maximumf %81, %82 : vector<2x96xf32>
    %84 = arith.truncf %83 : vector<2x96xf32> to vector<2x96xbf16>
    %c0_57 = arith.constant 0 : index
    %c0_58 = arith.constant 0 : index
    %85 = vector.load %arg18[%c0_57, %c0_58] : memref<96x96xbf16, #tpu.memory_space<vmem>>, vector<96x96xbf16>
    %cst_59 = arith.constant dense<0.000000e+00> : vector<2x96xf32>
    %86 = tpu.matmul %84, %85, %cst_59 {dimension_numbers = #tpu.dot_dimension_numbers<[1], [0], [0], [1], [0, 0, 1, 1], [], []>} : vector<2x96xbf16>, vector<96x96xbf16>, vector<2x96xf32> -> vector<2x96xf32>
    %c0_60 = arith.constant 0 : index
    %c0_61 = arith.constant 0 : index
    %87 = vector.load %arg19[%c0_60, %c0_61] : memref<1x96xf32, #tpu.memory_space<vmem>>, vector<1x96xf32>
    %88 = vector.broadcast %87 : vector<1x96xf32> to vector<2x96xf32>
    %89 = arith.addf %86, %88 : vector<2x96xf32>
    %c0_62 = arith.constant 0 : index
    %c0_63 = arith.constant 0 : index
    %90 = vector.load %arg20[%c0_62, %c0_63] : memref<2x96xf32, #tpu.memory_space<vmem>>, vector<2x96xf32>
    tpu.vector_store %arg20[%c0_62, %c0_63], %89 {strides = array<i32>} : memref<2x96xf32, #tpu.memory_space<vmem>>, vector<2x96xf32>,
    return
  }
  func.func @transform_0(%arg0: i32) -> (i32, i32) {
    %c0_i32 = arith.constant 0 : i32
    %c0_i32_0 = arith.constant 0 : i32
    %c0_i32_1 = arith.constant 0 : i32
    return %c0_i32, %c0_i32_0 : i32, i32
  }
  func.func @transform_1(%arg0: i32) -> (i32, i32) {
    %c0_i32 = arith.constant 0 : i32
    %c0_i32_0 = arith.constant 0 : i32
    %c0_i32_1 = arith.constant 0 : i32
    return %c0_i32, %c0_i32_0 : i32, i32
  }
  func.func @transform_2(%arg0: i32) -> (i32, i32) {
    %c0_i32 = arith.constant 0 : i32
    %c0_i32_0 = arith.constant 0 : i32
    %c0_i32_1 = arith.constant 0 : i32
    return %c0_i32, %c0_i32_0 : i32, i32
  }
  func.func @transform_3(%arg0: i32) -> (i32, i32) {
    %c0_i32 = arith.constant 0 : i32
    %c0_i32_0 = arith.constant 0 : i32
    %c0_i32_1 = arith.constant 0 : i32
    return %c0_i32, %c0_i32_0 : i32, i32
  }
  func.func @transform_4(%arg0: i32) -> (i32, i32) {
    %c0_i32 = arith.constant 0 : i32
    %c0_i32_0 = arith.constant 0 : i32
    %c0_i32_1 = arith.constant 0 : i32
    return %c0_i32, %c0_i32_0 : i32, i32
  }
  func.func @transform_5(%arg0: i32) -> (i32, i32) {
    %c0_i32 = arith.constant 0 : i32
    %c0_i32_0 = arith.constant 0 : i32
    %c0_i32_1 = arith.constant 0 : i32
    return %c0_i32, %c0_i32_0 : i32, i32
  }
  func.func @transform_6(%arg0: i32) -> (i32, i32) {
    %c0_i32 = arith.constant 0 : i32
    %c0_i32_0 = arith.constant 0 : i32
    %c0_i32_1 = arith.constant 0 : i32
    return %c0_i32, %c0_i32_0 : i32, i32
  }
  func.func @transform_7(%arg0: i32) -> (i32, i32) {
    %c0_i32 = arith.constant 0 : i32
    %c0_i32_0 = arith.constant 0 : i32
    %c0_i32_1 = arith.constant 0 : i32
    return %c0_i32, %c0_i32_0 : i32, i32
  }
  func.func @transform_8(%arg0: i32) -> (i32, i32) {
    %c0_i32 = arith.constant 0 : i32
    %c0_i32_0 = arith.constant 0 : i32
    %c0_i32_1 = arith.constant 0 : i32
    return %c0_i32, %c0_i32_0 : i32, i32
  }
  func.func @transform_9(%arg0: i32) -> (i32, i32) {
    %c0_i32 = arith.constant 0 : i32
    %c0_i32_0 = arith.constant 0 : i32
    %c0_i32_1 = arith.constant 0 : i32
    return %c0_i32, %c0_i32_0 : i32, i32
  }
  func.func @transform_10(%arg0: i32) -> (i32, i32) {
    %c0_i32 = arith.constant 0 : i32
    %c0_i32_0 = arith.constant 0 : i32
    %c0_i32_1 = arith.constant 0 : i32
    return %c0_i32, %c0_i32_0 : i32, i32
  }
  func.func @transform_11(%arg0: i32) -> (i32, i32) {
    %c0_i32 = arith.constant 0 : i32
    %c0_i32_0 = arith.constant 0 : i32
    %c0_i32_1 = arith.constant 0 : i32
    return %c0_i32, %c0_i32_0 : i32, i32
  }
  func.func @transform_12(%arg0: i32) -> (i32, i32) {
    %c0_i32 = arith.constant 0 : i32
    %c0_i32_0 = arith.constant 0 : i32
    %c0_i32_1 = arith.constant 0 : i32
    return %c0_i32, %c0_i32_0 : i32, i32
  }
  func.func @transform_13(%arg0: i32) -> (i32, i32) {
    %c0_i32 = arith.constant 0 : i32
    %c0_i32_0 = arith.constant 0 : i32
    %c0_i32_1 = arith.constant 0 : i32
    return %c0_i32, %c0_i32_0 : i32, i32
  }
  func.func @transform_14(%arg0: i32) -> (i32, i32) {
    %c0_i32 = arith.constant 0 : i32
    %c0_i32_0 = arith.constant 0 : i32
    %c0_i32_1 = arith.constant 0 : i32
    return %c0_i32, %c0_i32_0 : i32, i32
  }
  func.func @transform_15(%arg0: i32) -> (i32, i32) {
    %c0_i32 = arith.constant 0 : i32
    %c0_i32_0 = arith.constant 0 : i32
    %c0_i32_1 = arith.constant 0 : i32
    return %c0_i32, %c0_i32_0 : i32, i32
  }
  func.func @transform_16(%arg0: i32) -> (i32, i32) {
    %c0_i32 = arith.constant 0 : i32
    %c0_i32_0 = arith.constant 0 : i32
    %c0_i32_1 = arith.constant 0 : i32
    return %c0_i32, %c0_i32_0 : i32, i32
  }
  func.func @transform_17(%arg0: i32) -> (i32, i32) {
    %c0_i32 = arith.constant 0 : i32
    %c0_i32_0 = arith.constant 0 : i32
    %c0_i32_1 = arith.constant 0 : i32
    return %c0_i32, %c0_i32_0 : i32, i32
  }
  func.func @transform_18(%arg0: i32) -> (i32, i32) {
    %c0_i32 = arith.constant 0 : i32
    %c0_i32_0 = arith.constant 0 : i32
    %c0_i32_1 = arith.constant 0 : i32
    return %c0_i32, %c0_i32_0 : i32, i32
  }
  func.func @transform_19(%arg0: i32) -> (i32, i32) {
    %c0_i32 = arith.constant 0 : i32
    %c0_i32_0 = arith.constant 0 : i32
    %c0_i32_1 = arith.constant 0 : i32
    return %c0_i32, %c0_i32_0 : i32, i32
  }
}

</mosaic_0001>

<llo_original>
// kernel: simclr_forward.1
$region0: #{simclr_forward.1}
  #allocation0 [shape = 'u32[]', space=smem, size = 0x4, offset = 0x4, fixed_abs, tag = 'smem constant byte address 0x4 - core index']
  #allocation1 [shape = 'u32[144,128]{1,0:T(1,128)}', space=vmem, size = 0x12000, scoped, tag = 'internal scratch']
  %s0 = inlined_call_operand.vmem [shape: f32[16,4], index: 0, kind: input, shape index: {}]
  %s1 = inlined_call_operand.vmem [shape: bf16[16,16], index: 1, kind: input, shape index: {}]
  %s2 = inlined_call_operand.vmem [shape: bf16[2,16], index: 2, kind: input, shape index: {}]
  %s3 = inlined_call_operand.vmem [shape: bf16[4,32], index: 3, kind: input, shape index: {}]
  %s4 = inlined_call_operand.vmem [shape: f32[1,32], index: 4, kind: input, shape index: {}]
  %s5 = inlined_call_operand.vmem [shape: bf16[32,32], index: 5, kind: input, shape index: {}]
  %s6 = inlined_call_operand.vmem [shape: f32[1,32], index: 6, kind: input, shape index: {}]
  %s7 = inlined_call_operand.hbm [shape: bf16[32,32], index: 7, kind: input, shape index: {}]
  %s8 = inlined_call_operand.hbm [shape: f32[1,32], index: 8, kind: input, shape index: {}]
  %s9 = inlined_call_operand.hbm [shape: bf16[32,32], index: 9, kind: input, shape index: {}]
  %s10 = inlined_call_operand.hbm [shape: f32[1,32], index: 10, kind: input, shape index: {}]
  %s11 = inlined_call_operand.hbm [shape: bf16[32,32], index: 11, kind: input, shape index: {}]
  %s12 = inlined_call_operand.hbm [shape: f32[1,32], index: 12, kind: input, shape index: {}]
  %s13 = inlined_call_operand.hbm [shape: bf16[32,32], index: 13, kind: input, shape index: {}]
  %s14 = inlined_call_operand.hbm [shape: f32[1,32], index: 14, kind: input, shape index: {}]
  %s15 = inlined_call_operand.vmem [shape: bf16[96,96], index: 15, kind: input, shape index: {}]
  %s16 = inlined_call_operand.hbm [shape: f32[1,96], index: 16, kind: input, shape index: {}]
  %s17 = inlined_call_operand.hbm [shape: bf16[96,96], index: 17, kind: input, shape index: {}]
  %s18 = inlined_call_operand.hbm [shape: f32[1,96], index: 18, kind: input, shape index: {}]
  %s19 = inlined_call_operand.hbm [shape: f32[2,96], index: 19, kind: output, shape index: {}]
  %s20 = sld [smem:[#allocation0]]
  $region130: #{simclr_forward.1} parent=0
    _
  %s22 = ssub.s32 1, %s20
  %s23 = scalar_select 0, %s22, %s20
  $region1: #{simclr_forward.1} parent=0
    #allocation2 [shape = 'u8[8192]{0}', space=vmem, size = 0x2000, scoped, tag = 'input window, operand 7, single buffered']
    #allocation3 [shape = 's32[1]{0}', space=sflag, size = 0x4, scoped, tag = 'scoped memory for simclr_forward.1']
    #allocation4 [shape = 's32[1]{0}', space=sflag, size = 0x4, scoped, tag = 'scoped memory for simclr_forward.1']
    #allocation5 [shape = 'u8[512]{0}', space=vmem, size = 0x400, scoped, tag = 'input window, operand 8, single buffered']
    #allocation6 [shape = 's32[1]{0}', space=sflag, size = 0x4, scoped, tag = 'scoped memory for simclr_forward.1']
    #allocation7 [shape = 'u8[8192]{0}', space=vmem, size = 0x2000, scoped, tag = 'input window, operand 9, single buffered']
    #allocation8 [shape = 'u8[512]{0}', space=vmem, size = 0x400, scoped, tag = 'input window, operand 10, single buffered']
    #allocation9 [shape = 's32[1]{0}', space=sflag, size = 0x4, scoped, tag = 'scoped memory for simclr_forward.1']
    #allocation10 [shape = 'u8[8192]{0}', space=vmem, size = 0x2000, scoped, tag = 'input window, operand 11, single buffered']
    #allocation11 [shape = 'u8[512]{0}', space=vmem, size = 0x400, scoped, tag = 'input window, operand 12, single buffered']
    #allocation12 [shape = 's32[1]{0}', space=sflag, size = 0x4, scoped, tag = 'scoped memory for simclr_forward.1']
    #allocation13 [shape = 'u8[8192]{0}', space=vmem, size = 0x2000, scoped, tag = 'input window, operand 13, single buffered']
    #allocation14 [shape = 'u8[512]{0}', space=vmem, size = 0x400, scoped, tag = 'input window, operand 14, single buffered']
    #allocation15 [shape = 's32[1]{0}', space=sflag, size = 0x4, scoped, tag = 'scoped memory for simclr_forward.1']
    #allocation16 [shape = 'u8[512]{0}', space=vmem, size = 0x400, scoped, tag = 'input window, operand 16, single buffered']
    #allocation17 [shape = 'u8[24576]{0}', space=vmem, size = 0x6000, scoped, tag = 'input window, operand 17, single buffered']
    #allocation18 [shape = 's32[1]{0}', space=sflag, size = 0x4, scoped, tag = 'scoped memory for simclr_forward.1']
    #allocation19 [shape = 'u8[512]{0}', space=vmem, size = 0x400, scoped, tag = 'input window, operand 18, single buffered']
    #allocation20 [shape = 'u8[1024]{0}', space=vmem, size = 0x400, scoped, tag = 'output window, operand 0, single buffered']
    %24 = vsyncpa [#allocation3], 0
    %25 = vsyncpa [#allocation6], 0
    %26 = vsyncpa [#allocation9], 0
    %27 = vsyncpa [#allocation12], 0
    %28 = vsyncpa [#allocation15], 0
    %29 = vsyncpa [#allocation18], 0
    %30 = vsyncpa [#allocation4], 0
    // Predicated region
    $region2: #{simclr_forward.1} parent=1 // pred_check
      _
    $region3: #{simclr_forward.1} parent=1 // pred_check_branch
      %32 = sbr.rel (0) target = $region5
    $region4: #{simclr_forward.1} parent=1 // pred_region
      _
    $region5: #{simclr_forward.1} parent=1 // pred_fallthru
      _
    // Predicated region
    $region6: #{simclr_forward.1} parent=1 // pred_check
      _
    $region7: #{simclr_forward.1} parent=1 // pred_check_branch
      %34 = sbr.rel (0) target = $region9
    $region8: #{simclr_forward.1} parent=1 // pred_region
      _
    $region9: #{simclr_forward.1} parent=1 // pred_fallthru
      _
    // Predicated region
    $region10: #{simclr_forward.1} parent=1 // pred_check
      _
    $region11: #{simclr_forward.1} parent=1 // pred_check_branch
      %36 = sbr.rel (0) target = $region13
    $region12: #{simclr_forward.1} parent=1 // pred_region
      _
    $region13: #{simclr_forward.1} parent=1 // pred_fallthru
      _
    // Predicated region
    $region14: #{simclr_forward.1} parent=1 // pred_check
      _
    $region15: #{simclr_forward.1} parent=1 // pred_check_branch
      %38 = sbr.rel (0) target = $region17
    $region16: #{simclr_forward.1} parent=1 // pred_region
      _
    $region17: #{simclr_forward.1} parent=1 // pred_fallthru
      _
    // Predicated region
    $region18: #{simclr_forward.1} parent=1 // pred_check
      _
    $region19: #{simclr_forward.1} parent=1 // pred_check_branch
      %40 = sbr.rel (0) target = $region21
    $region20: #{simclr_forward.1} parent=1 // pred_region
      _
    $region21: #{simclr_forward.1} parent=1 // pred_fallthru
      _
    // Predicated region
    $region22: #{simclr_forward.1} parent=1 // pred_check
      _
    $region23: #{simclr_forward.1} parent=1 // pred_check_branch
      %42 = sbr.rel (0) target = $region25
    $region24: #{simclr_forward.1} parent=1 // pred_region
      _
    $region25: #{simclr_forward.1} parent=1 // pred_fallthru
      _
    // Predicated region
    $region26: #{simclr_forward.1} parent=1 // pred_check
      _
    $region27: #{simclr_forward.1} parent=1 // pred_check_branch
      %44 = sbr.rel (0) target = $region29
    $region28: #{simclr_forward.1} parent=1 // pred_region
      _
    $region29: #{simclr_forward.1} parent=1 // pred_fallthru
      _
    // Predicated region
    $region30: #{simclr_forward.1} parent=1 // pred_check
      _
    $region31: #{simclr_forward.1} parent=1 // pred_check_branch
      %46 = sbr.rel (0) target = $region33
    $region32: #{simclr_forward.1} parent=1 // pred_region
      %s48 = ssub.s32 256, 256
      %49 = vsyncadd [#allocation3], %s48
      %s50 = sshll.u32 [#allocation2], 4
      %s51 = int_to_ptr.vmem [resolvable:$true] %s50
      %56 = dma.hbm_to_vmem [thread:$0]  %s7, 256, %s51, [#allocation3], 64, 64, 4
    $region33: #{simclr_forward.1} parent=1 // pred_fallthru
      _
    // Predicated region
    $region34: #{simclr_forward.1} parent=1 // pred_check
      _
    $region35: #{simclr_forward.1} parent=1 // pred_check_branch
      %58 = sbr.rel (0) target = $region37
    $region36: #{simclr_forward.1} parent=1 // pred_region
      %s60 = ssub.s32 16, 16
      %61 = vsyncadd [#allocation6], %s60
      %s63 = sshll.u32 [#allocation5], 4
      %s64 = int_to_ptr.vmem [resolvable:$true] %s63
      %66 = dma.hbm_to_vmem [thread:$0]  %s8, 16, %s64, [#allocation6]
    $region37: #{simclr_forward.1} parent=1 // pred_fallthru
      _
    // Predicated region
    $region38: #{simclr_forward.1} parent=1 // pred_check
      _
    $region39: #{simclr_forward.1} parent=1 // pred_check_branch
      %68 = sbr.rel (0) target = $region41
    $region40: #{simclr_forward.1} parent=1 // pred_region
      %s70 = ssub.s32 256, 256
      %71 = vsyncadd [#allocation6], %s70
      %s72 = sshll.u32 [#allocation7], 4
      %s73 = int_to_ptr.vmem [resolvable:$true] %s72
      %78 = dma.hbm_to_vmem [thread:$0]  %s9, 256, %s73, [#allocation6], 64, 64, 4
    $region41: #{simclr_forward.1} parent=1 // pred_fallthru
      _
    // Predicated region
    $region42: #{simclr_forward.1} parent=1 // pred_check
      _
    $region43: #{simclr_forward.1} parent=1 // pred_check_branch
      %80 = sbr.rel (0) target = $region45
    $region44: #{simclr_forward.1} parent=1 // pred_region
      %s82 = ssub.s32 16, 16
      %83 = vsyncadd [#allocation9], %s82
      %s85 = sshll.u32 [#allocation8], 4
      %s86 = int_to_ptr.vmem [resolvable:$true] %s85
      %88 = dma.hbm_to_vmem [thread:$0]  %s10, 16, %s86, [#allocation9]
    $region45: #{simclr_forward.1} parent=1 // pred_fallthru
      _
    // Predicated region
    $region46: #{simclr_forward.1} parent=1 // pred_check
      _
    $region47: #{simclr_forward.1} parent=1 // pred_check_branch
      %90 = sbr.rel (0) target = $region49
    $region48: #{simclr_forward.1} parent=1 // pred_region
      %s92 = ssub.s32 256, 256
      %93 = vsyncadd [#allocation9], %s92
      %s94 = sshll.u32 [#allocation10], 4
      %s95 = int_to_ptr.vmem [resolvable:$true] %s94
      %100 = dma.hbm_to_vmem [thread:$0]  %s11, 256, %s95, [#allocation9], 64, 64, 4
    $region49: #{simclr_forward.1} parent=1 // pred_fallthru
      _
    // Predicated region
    $region50: #{simclr_forward.1} parent=1 // pred_check
      _
    $region51: #{simclr_forward.1} parent=1 // pred_check_branch
      %102 = sbr.rel (0) target = $region53
    $region52: #{simclr_forward.1} parent=1 // pred_region
      %s104 = ssub.s32 16, 16
      %105 = vsyncadd [#allocation12], %s104
      %s107 = sshll.u32 [#allocation11], 4
      %s108 = int_to_ptr.vmem [resolvable:$true] %s107
      %110 = dma.hbm_to_vmem [thread:$0]  %s12, 16, %s108, [#allocation12]
    $region53: #{simclr_forward.1} parent=1 // pred_fallthru
      _
    // Predicated region
    $region54: #{simclr_forward.1} parent=1 // pred_check
      _
    $region55: #{simclr_forward.1} parent=1 // pred_check_branch
      %112 = sbr.rel (0) target = $region57
    $region56: #{simclr_forward.1} parent=1 // pred_region
      %s114 = ssub.s32 256, 256
      %115 = vsyncadd [#allocation12], %s114
      %s116 = sshll.u32 [#allocation13], 4
      %s117 = int_to_ptr.vmem [resolvable:$true] %s116
      %122 = dma.hbm_to_vmem [thread:$0]  %s13, 256, %s117, [#allocation12], 64, 64, 4
    $region57: #{simclr_forward.1} parent=1 // pred_fallthru
      _
    // Predicated region
    $region58: #{simclr_forward.1} parent=1 // pred_check
      _
    $region59: #{simclr_forward.1} parent=1 // pred_check_branch
      %124 = sbr.rel (0) target = $region61
    $region60: #{simclr_forward.1} parent=1 // pred_region
      %s126 = ssub.s32 16, 16
      %127 = vsyncadd [#allocation15], %s126
      %s129 = sshll.u32 [#allocation14], 4
      %s130 = int_to_ptr.vmem [resolvable:$true] %s129
      %132 = dma.hbm_to_vmem [thread:$0]  %s14, 16, %s130, [#allocation15]
    $region61: #{simclr_forward.1} parent=1 // pred_fallthru
      _
    // Predicated region
    $region62: #{simclr_forward.1} parent=1 // pred_check
      _
    $region63: #{simclr_forward.1} parent=1 // pred_check_branch
      %134 = sbr.rel (0) target = $region65
    $region64: #{simclr_forward.1} parent=1 // pred_region
      _
    $region65: #{simclr_forward.1} parent=1 // pred_fallthru
      _
    // Predicated region
    $region66: #{simclr_forward.1} parent=1 // pred_check
      _
    $region67: #{simclr_forward.1} parent=1 // pred_check_branch
      %136 = sbr.rel (0) target = $region69
    $region68: #{simclr_forward.1} parent=1 // pred_region
      %s138 = ssub.s32 16, 16
      %139 = vsyncadd [#allocation15], %s138
      %s141 = sshll.u32 [#allocation16], 4
      %s142 = int_to_ptr.vmem [resolvable:$true] %s141
      %144 = dma.hbm_to_vmem [thread:$0]  %s16, 16, %s142, [#allocation15]
    $region69: #{simclr_forward.1} parent=1 // pred_fallthru
      _
    // Predicated region
    $region70: #{simclr_forward.1} parent=1 // pred_check
      _
    $region71: #{simclr_forward.1} parent=1 // pred_check_branch
      %146 = sbr.rel (0) target = $region73
    $region72: #{simclr_forward.1} parent=1 // pred_region
      %s148 = ssub.s32 768, 768
      %149 = vsyncadd [#allocation18], %s148
      %s150 = sshll.u32 [#allocation17], 4
      %s151 = int_to_ptr.vmem [resolvable:$true] %s150
      %156 = dma.hbm_to_vmem [thread:$0]  %s17, 768, %s151, [#allocation18], 64, 64, 4
    $region73: #{simclr_forward.1} parent=1 // pred_fallthru
      _
    // Predicated region
    $region74: #{simclr_forward.1} parent=1 // pred_check
      _
    $region75: #{simclr_forward.1} parent=1 // pred_check_branch
      %158 = sbr.rel (0) target = $region77
    $region76: #{simclr_forward.1} parent=1 // pred_region
      %s160 = ssub.s32 16, 16
      %161 = vsyncadd [#allocation18], %s160
      %s163 = sshll.u32 [#allocation19], 4
      %s164 = int_to_ptr.vmem [resolvable:$true] %s163
      %166 = dma.hbm_to_vmem [thread:$0]  %s18, 16, %s164, [#allocation18]
    $region77: #{simclr_forward.1} parent=1 // pred_fallthru
      _
    // Predicated region
    $region78: #{simclr_forward.1} parent=1 // pred_check
      _
    $region79: #{simclr_forward.1} parent=1 // pred_check_branch
      %168 = sbr.rel (0) target = $region81
    $region80: #{simclr_forward.1} parent=1 // pred_region
      %169 = dma.done [#allocation3], 256
    $region81: #{simclr_forward.1} parent=1 // pred_fallthru
      _
    // Predicated region
    $region82: #{simclr_forward.1} parent=1 // pred_check
      _
    $region83: #{simclr_forward.1} parent=1 // pred_check_branch
      %171 = sbr.rel (0) target = $region85
    $region84: #{simclr_forward.1} parent=1 // pred_region
      %172 = dma.done [#allocation6], 16
    $region85: #{simclr_forward.1} parent=1 // pred_fallthru
      _
    // Predicated region
    $region86: #{simclr_forward.1} parent=1 // pred_check
      _
    $region87: #{simclr_forward.1} parent=1 // pred_check_branch
      %174 = sbr.rel (0) target = $region89
    $region88: #{simclr_forward.1} parent=1 // pred_region
      %175 = dma.done [#allocation6], 256
    $region89: #{simclr_forward.1} parent=1 // pred_fallthru
      _
    // Predicated region
    $region90: #{simclr_forward.1} parent=1 // pred_check
      _
    $region91: #{simclr_forward.1} parent=1 // pred_check_branch
      %177 = sbr.rel (0) target = $region93
    $region92: #{simclr_forward.1} parent=1 // pred_region
      %178 = dma.done [#allocation9], 16
    $region93: #{simclr_forward.1} parent=1 // pred_fallthru
      _
    // Predicated region
    $region94: #{simclr_forward.1} parent=1 // pred_check
      _
    $region95: #{simclr_forward.1} parent=1 // pred_check_branch
      %180 = sbr.rel (0) target = $region97
    $region96: #{simclr_forward.1} parent=1 // pred_region
      %181 = dma.done [#allocation9], 256
    $region97: #{simclr_forward.1} parent=1 // pred_fallthru
      _
    // Predicated region
    $region98: #{simclr_forward.1} parent=1 // pred_check
      _
    $region99: #{simclr_forward.1} parent=1 // pred_check_branch
      %183 = sbr.rel (0) target = $region101
    $region100: #{simclr_forward.1} parent=1 // pred_region
      %184 = dma.done [#allocation12], 16
    $region101: #{simclr_forward.1} parent=1 // pred_fallthru
      _
    // Predicated region
    $region102: #{simclr_forward.1} parent=1 // pred_check
      _
    $region103: #{simclr_forward.1} parent=1 // pred_check_branch
      %186 = sbr.rel (0) target = $region105
    $region104: #{simclr_forward.1} parent=1 // pred_region
      %187 = dma.done [#allocation12], 256
    $region105: #{simclr_forward.1} parent=1 // pred_fallthru
      _
    // Predicated region
    $region106: #{simclr_forward.1} parent=1 // pred_check
      _
    $region107: #{simclr_forward.1} parent=1 // pred_check_branch
      %189 = sbr.rel (0) target = $region109
    $region108: #{simclr_forward.1} parent=1 // pred_region
      %190 = dma.done [#allocation15], 16
    $region109: #{simclr_forward.1} parent=1 // pred_fallthru
      _
    // Predicated region
    $region110: #{simclr_forward.1} parent=1 // pred_check
      _
    $region111: #{simclr_forward.1} parent=1 // pred_check_branch
      %192 = sbr.rel (0) target = $region113
    $region112: #{simclr_forward.1} parent=1 // pred_region
      %193 = dma.done [#allocation15], 16
    $region113: #{simclr_forward.1} parent=1 // pred_fallthru
      _
    // Predicated region
    $region114: #{simclr_forward.1} parent=1 // pred_check
      _
    $region115: #{simclr_forward.1} parent=1 // pred_check_branch
      %195 = sbr.rel (0) target = $region117
    $region116: #{simclr_forward.1} parent=1 // pred_region
      %196 = dma.done [#allocation18], 768
    $region117: #{simclr_forward.1} parent=1 // pred_fallthru
      _
    // Predicated region
    $region118: #{simclr_forward.1} parent=1 // pred_check
      _
    $region119: #{simclr_forward.1} parent=1 // pred_check_branch
      %198 = sbr.rel (0) target = $region121
    $region120: #{simclr_forward.1} parent=1 // pred_region
      %199 = dma.done [#allocation18], 16
    $region121: #{simclr_forward.1} parent=1 // pred_fallthru
      _
    %v201 = vld [vmem:[%s1] sm:$0xf]
    %v202 = vld [vmem:[%s1 + $0x4] sm:$0xf]
    %v203 = vld [vmem:[%s2] sm:$0x1]
    %v204 = vld [vmem:[%s0] sm:$0xff]
    %v205 = vld [vmem:[%s0 + $0x8] sm:$0xff]
    %v206 = vpack.c.bf16 %v205, %v204
    %v209 = vunpack.c.l.b16 %v201
    %v210 = vunpack.c.l.b16 %v202
    %v211 = vpack.c.b16 %v210, %v209
    %vm212 = vcmask 130048
    %v214 = vsel %vm212, %v211, 0
    %216 = vmatprep.subr.bf16.mxu0 0
    %217 = vmatpush1.bf16.msra.mxu0 0
    %218 = vmatprep.subr.bf16.mxu0 0
    %219 = vmatpush1.bf16.msra.mxu0 0
    %220 = vmatprep.subr.bf16.mxu0 0
    %221 = vmatpush1.bf16.msra.mxu0 0
    %222 = vmatprep.subr.bf16.mxu0 0
    %223 = vmatpush1.bf16.msra.mxu0 0
    %224 = vmatprep.subr.bf16.mxu0 0
    %225 = vmatpush1.bf16.msra.mxu0 0
    %226 = vmatprep.subr.bf16.mxu0 0
    %227 = vmatpush1.bf16.msra.mxu0 0
    %228 = vmatprep.subr.bf16.mxu0 0
    %229 = vmatpush1.bf16.msra.mxu0 0
    %230 = vmatprep.subr.bf16.mxu0 0
    %231 = vmatpush1.bf16.msra.mxu0 %v206
    %232 = vmatprep.subr.bf16.mxu0 0
    %233 = vmatpush2.bf16.msra.mxu0 0
    %234 = vmatprep.subr.bf16.mxu0 0
    %235 = vmatpush2.bf16.msra.mxu0 0
    %236 = vmatprep.subr.bf16.mxu0 0
    %237 = vmatpush2.bf16.msra.mxu0 0
    %238 = vmatprep.subr.bf16.mxu0 0
    %239 = vmatpush2.bf16.msra.mxu0 0
    %240 = vmatprep.subr.bf16.mxu0 0
    %241 = vmatpush2.bf16.msra.mxu0 0
    %242 = vmatprep.subr.bf16.mxu0 0
    %243 = vmatpush2.bf16.msra.mxu0 0
    %244 = vmatprep.subr.bf16.mxu0 0
    %245 = vmatpush2.bf16.msra.mxu0 0
    %246 = vmatprep.subr.bf16.mxu0 0
    %247 = vmatpush2.bf16.msra.mxu0 0
    %248 = vmatprep.mubr.bf16.mxu0 0
    %249 = vmatmul.mubr.bf16.gmra.mxu0 %v214
    %v250 = vpop.f32.mrf.mxu0
    %v251 = vadd.f32 %v204, %v250
    %v252 = vpop.f32.mrf.mxu0
    %v253 = vpop.f32.mrf.mxu0
    %v254 = vadd.f32 %v205, %v253
    %v255 = vpop.f32.mrf.mxu0
    %256 = vdwg.mxu0
    %v257 = vpack.c.bf16 %v254, %v251
    %v258 = vld [vmem:[%s3] sm:$0x3]
    %v259 = vld [vmem:[%s4] sm:$0x1]
    %v261 = vlaneseq
    %v262 = vshrl.u32 %v261, 7
    %v263 = vsub.s32 0, %v262
    %v264 = vrot.slane %v259, %v263
    %vm266 = vcmask 31744
    %v268 = vsel %vm266, %v257, 0
    %vm270 = vcmask 1041408
    %v272 = vsel %vm270, %v258, 0
    %274 = vmatprep.subr.bf16.mxu0 0
    %275 = vmatpush1.bf16.msra.mxu0 0
    %276 = vmatprep.subr.bf16.mxu0 0
    %277 = vmatpush1.bf16.msra.mxu0 0
    %278 = vmatprep.subr.bf16.mxu0 0
    %279 = vmatpush1.bf16.msra.mxu0 0
    %280 = vmatprep.subr.bf16.mxu0 0
    %281 = vmatpush1.bf16.msra.mxu0 0
    %282 = vmatprep.subr.bf16.mxu0 0
    %283 = vmatpush1.bf16.msra.mxu0 0
    %284 = vmatprep.subr.bf16.mxu0 0
    %285 = vmatpush1.bf16.msra.mxu0 0
    %286 = vmatprep.subr.bf16.mxu0 0
    %287 = vmatpush1.bf16.msra.mxu0 0
    %288 = vmatprep.subr.bf16.mxu0 0
    %289 = vmatpush1.bf16.msra.mxu0 %v272
    %290 = vmatprep.subr.bf16.mxu0 0
    %291 = vmatpush2.bf16.msra.mxu0 0
    %292 = vmatprep.subr.bf16.mxu0 0
    %293 = vmatpush2.bf16.msra.mxu0 0
    %294 = vmatprep.subr.bf16.mxu0 0
    %295 = vmatpush2.bf16.msra.mxu0 0
    %296 = vmatprep.subr.bf16.mxu0 0
    %297 = vmatpush2.bf16.msra.mxu0 0
    %298 = vmatprep.subr.bf16.mxu0 0
    %299 = vmatpush2.bf16.msra.mxu0 0
    %300 = vmatprep.subr.bf16.mxu0 0
    %301 = vmatpush2.bf16.msra.mxu0 0
    %302 = vmatprep.subr.bf16.mxu0 0
    %303 = vmatpush2.bf16.msra.mxu0 0
    %304 = vmatprep.subr.bf16.mxu0 0
    %305 = vmatpush2.bf16.msra.mxu0 0
    %306 = vmatprep.mubr.bf16.mxu0 0
    %307 = vmatmul.mubr.bf16.gmra.mxu0 %v268
    %v308 = vpop.f32.mrf.mxu0
    %v309 = vadd.f32 %v264, %v308
    %v310 = vpop.f32.mrf.mxu0
    %v311 = vpop.f32.mrf.mxu0
    %v312 = vadd.f32 %v264, %v311
    %v313 = vpop.f32.mrf.mxu0
    %314 = vdwg.mxu0
    %v315 = vmax.f32 %v309, 0.0
    %v316 = vmax.f32 %v312, 0.0
    %v317 = vpack.c.bf16 %v316, %v315
    %v318 = vld [vmem:[%s5] sm:$0xf]
    %v319 = vld [vmem:[%s5 + $0x4] sm:$0xf]
    %v320 = vld [vmem:[%s5 + $0x8] sm:$0xf]
    %v321 = vld [vmem:[%s5 + $0xc] sm:$0xf]
    %v322 = vld [vmem:[%s6] sm:$0x1]
    %v324 = vlaneseq
    %v325 = vshrl.u32 %v324, 7
    %v326 = vsub.s32 0, %v325
    %v327 = vrot.slane %v322, %v326
    %v333 = vunpack.c.l.b16 %v318
    %v334 = vunpack.c.l.b16 %v319
    %v335 = vunpack.c.l.b16 %v320
    %v336 = vunpack.c.l.b16 %v321
    %v337 = vpack.c.b16 %v334, %v333
    %v338 = vpack.c.b16 %v336, %v335
    %vm341 = vcmask 261120
    %v343 = vsel %vm341, %v317, 0
    %345 = vmatprep.subr.bf16.mxu0 0
    %346 = vmatpush1.bf16.msra.mxu0 0
    %347 = vmatprep.subr.bf16.mxu0 0
    %348 = vmatpush1.bf16.msra.mxu0 0
    %349 = vmatprep.subr.bf16.mxu0 0
    %350 = vmatpush1.bf16.msra.mxu0 0
    %351 = vmatprep.subr.bf16.mxu0 0
    %352 = vmatpush1.bf16.msra.mxu0 0
    %353 = vmatprep.subr.bf16.mxu0 0
    %354 = vmatpush1.bf16.msra.mxu0 0
    %355 = vmatprep.subr.bf16.mxu0 0
    %356 = vmatpush1.bf16.msra.mxu0 0
    %357 = vmatprep.subr.bf16.mxu0 0
    %358 = vmatpush1.bf16.msra.mxu0 %v338
    %359 = vmatprep.subr.bf16.mxu0 0
    %360 = vmatpush1.bf16.msra.mxu0 %v337
    %361 = vmatprep.subr.bf16.mxu0 0
    %362 = vmatpush2.bf16.msra.mxu0 0
    %363 = vmatprep.subr.bf16.mxu0 0
    %364 = vmatpush2.bf16.msra.mxu0 0
    %365 = vmatprep.subr.bf16.mxu0 0
    %366 = vmatpush2.bf16.msra.mxu0 0
    %367 = vmatprep.subr.bf16.mxu0 0
    %368 = vmatpush2.bf16.msra.mxu0 0
    %369 = vmatprep.subr.bf16.mxu0 0
    %370 = vmatpush2.bf16.msra.mxu0 0
    %371 = vmatprep.subr.bf16.mxu0 0
    %372 = vmatpush2.bf16.msra.mxu0 0
    %373 = vmatprep.subr.bf16.mxu0 0
    %374 = vmatpush2.bf16.msra.mxu0 0
    %375 = vmatprep.subr.bf16.mxu0 0
    %376 = vmatpush2.bf16.msra.mxu0 0
    %377 = vmatprep.mubr.bf16.mxu0 0
    %378 = vmatmul.mubr.bf16.gmra.mxu0 %v343
    %v379 = vpop.f32.mrf.mxu0
    %v380 = vadd.f32 %v327, %v379
    %v381 = vpop.f32.mrf.mxu0
    %v382 = vpop.f32.mrf.mxu0
    %v383 = vadd.f32 %v327, %v382
    %v384 = vpop.f32.mrf.mxu0
    %385 = vdwg.mxu0
    %v386 = vmax.f32 %v380, 0.0
    %v387 = vmax.f32 %v383, 0.0
    %v388 = vpack.c.bf16 %v387, %v386
    %v390 = vsel %vm212, %v203, 0
    %392 = vmatprep.subr.bf16.mxu0 0
    %393 = vmatpush1.bf16.msra.mxu0 0
    %394 = vmatprep.subr.bf16.mxu0 0
    %395 = vmatpush1.bf16.msra.mxu0 0
    %396 = vmatprep.subr.bf16.mxu0 0
    %397 = vmatpush1.bf16.msra.mxu0 0
    %398 = vmatprep.subr.bf16.mxu0 0
    %399 = vmatpush1.bf16.msra.mxu0 0
    %400 = vmatprep.subr.bf16.mxu0 0
    %401 = vmatpush1.bf16.msra.mxu0 0
    %402 = vmatprep.subr.bf16.mxu0 0
    %403 = vmatpush1.bf16.msra.mxu0 0
    %404 = vmatprep.subr.bf16.mxu0 0
    %405 = vmatpush1.bf16.msra.mxu0 0
    %406 = vmatprep.subr.bf16.mxu0 0
    %407 = vmatpush1.bf16.msra.mxu0 %v388
    %408 = vmatprep.subr.bf16.mxu0 0
    %409 = vmatpush2.bf16.msra.mxu0 0
    %410 = vmatprep.subr.bf16.mxu0 0
    %411 = vmatpush2.bf16.msra.mxu0 0
    %412 = vmatprep.subr.bf16.mxu0 0
    %413 = vmatpush2.bf16.msra.mxu0 0
    %414 = vmatprep.subr.bf16.mxu0 0
    %415 = vmatpush2.bf16.msra.mxu0 0
    %416 = vmatprep.subr.bf16.mxu0 0
    %417 = vmatpush2.bf16.msra.mxu0 0
    %418 = vmatprep.subr.bf16.mxu0 0
    %419 = vmatpush2.bf16.msra.mxu0 0
    %420 = vmatprep.subr.bf16.mxu0 0
    %421 = vmatpush2.bf16.msra.mxu0 0
    %422 = vmatprep.subr.bf16.mxu0 0
    %423 = vmatpush2.bf16.msra.mxu0 0
    %424 = vmatprep.mubr.bf16.mxu0 0
    %425 = vmatmul.mubr.bf16.gmra.mxu0 %v390
    %v426 = vpop.f32.mrf.mxu0
    %v427 = vadd.f32 0.0, %v426
    %v428 = vpop.f32.mrf.mxu0
    %v429 = vpop.f32.mrf.mxu0
    %v430 = vpop.f32.mrf.mxu0
    %431 = vdwg.mxu0
    %v432 = vpack.c.bf16 %v427, %v427
    %v433 = vld [vmem:[%s15] sm:$0xf]
    %v434 = vld [vmem:[%s15 + $0x4] sm:$0xf]
    %v435 = vld [vmem:[%s15 + $0x8] sm:$0xf]
    %v436 = vld [vmem:[%s15 + $0xc] sm:$0xf]
    %437 = vmatprep.subr.bf16.mxu0 0
    %438 = vmatpush1.bf16.msra.mxu0 0
    %439 = vmatprep.subr.bf16.mxu0 0
    %440 = vmatpush1.bf16.msra.mxu0 0
    %441 = vmatprep.subr.bf16.mxu0 0
    %442 = vmatpush1.bf16.msra.mxu0 0
    %443 = vmatprep.subr.bf16.mxu0 0
    %444 = vmatpush1.bf16.msra.mxu0 0
    %445 = vmatprep.subr.bf16.mxu0 0
    %446 = vmatpush1.bf16.msra.mxu0 0
    %447 = vmatprep.subr.bf16.mxu0 0
    %448 = vmatpush1.bf16.msra.mxu0 0
    %449 = vmatprep.subr.bf16.mxu0 0
    %450 = vmatpush1.bf16.msra.mxu0 0
    %451 = vmatprep.subr.bf16.mxu0 0
    %452 = vmatpush1.bf16.msra.mxu0 %v388
    %453 = vmatprep.subr.bf16.mxu0 0
    %454 = vmatpush2.bf16.msra.mxu0 0
    %455 = vmatprep.subr.bf16.mxu0 0
    %456 = vmatpush2.bf16.msra.mxu0 0
    %457 = vmatprep.subr.bf16.mxu0 0
    %458 = vmatpush2.bf16.msra.mxu0 0
    %459 = vmatprep.subr.bf16.mxu0 0
    %460 = vmatpush2.bf16.msra.mxu0 0
    %461 = vmatprep.subr.bf16.mxu0 0
    %462 = vmatpush2.bf16.msra.mxu0 0
    %463 = vmatprep.subr.bf16.mxu0 0
    %464 = vmatpush2.bf16.msra.mxu0 0
    %465 = vmatprep.subr.bf16.mxu0 0
    %466 = vmatpush2.bf16.msra.mxu0 0
    %467 = vmatprep.subr.bf16.mxu0 0
    %468 = vmatpush2.bf16.msra.mxu0 0
    %469 = vmatprep.mubr.bf16.mxu0 0
    %470 = vmatmul.mubr.bf16.gmra.mxu0 %v214
    %v471 = vpop.f32.mrf.mxu0
    %v472 = vadd.f32 %v386, %v471
    %v473 = vpop.f32.mrf.mxu0
    %v474 = vpop.f32.mrf.mxu0
    %v475 = vadd.f32 %v387, %v474
    %v476 = vpop.f32.mrf.mxu0
    %477 = vdwg.mxu0
    %v478 = vpack.c.bf16 %v475, %v472
    %v479 = vld [vmem:[#allocation2] sm:$0xf]
    %v480 = vld [vmem:[#allocation2 + $0x4] sm:$0xf]
    %v481 = vld [vmem:[#allocation2 + $0x8] sm:$0xf]
    %v482 = vld [vmem:[#allocation2 + $0xc] sm:$0xf]
    %v483 = vld [vmem:[#allocation5] sm:$0x1]
    %v485 = vlaneseq
    %v486 = vshrl.u32 %v485, 7
    %v487 = vsub.s32 0, %v486
    %v488 = vrot.slane %v483, %v487
    %v494 = vunpack.c.l.b16 %v479
    %v495 = vunpack.c.l.b16 %v480
    %v496 = vunpack.c.l.b16 %v481
    %v497 = vunpack.c.l.b16 %v482
    %v498 = vpack.c.b16 %v495, %v494
    %v499 = vpack.c.b16 %v497, %v496
    %v503 = vsel %vm341, %v478, 0
    %505 = vmatprep.subr.bf16.mxu0 0
    %506 = vmatpush1.bf16.msra.mxu0 0
    %507 = vmatprep.subr.bf16.mxu0 0
    %508 = vmatpush1.bf16.msra.mxu0 0
    %509 = vmatprep.subr.bf16.mxu0 0
    %510 = vmatpush1.bf16.msra.mxu0 0
    %511 = vmatprep.subr.bf16.mxu0 0
    %512 = vmatpush1.bf16.msra.mxu0 0
    %513 = vmatprep.subr.bf16.mxu0 0
    %514 = vmatpush1.bf16.msra.mxu0 0
    %515 = vmatprep.subr.bf16.mxu0 0
    %516 = vmatpush1.bf16.msra.mxu0 0
    %517 = vmatprep.subr.bf16.mxu0 0
    %518 = vmatpush1.bf16.msra.mxu0 %v499
    %519 = vmatprep.subr.bf16.mxu0 0
    %520 = vmatpush1.bf16.msra.mxu0 %v498
    %521 = vmatprep.subr.bf16.mxu0 0
    %522 = vmatpush2.bf16.msra.mxu0 0
    %523 = vmatprep.subr.bf16.mxu0 0
    %524 = vmatpush2.bf16.msra.mxu0 0
    %525 = vmatprep.subr.bf16.mxu0 0
    %526 = vmatpush2.bf16.msra.mxu0 0
    %527 = vmatprep.subr.bf16.mxu0 0
    %528 = vmatpush2.bf16.msra.mxu0 0
    %529 = vmatprep.subr.bf16.mxu0 0
    %530 = vmatpush2.bf16.msra.mxu0 0
    %531 = vmatprep.subr.bf16.mxu0 0
    %532 = vmatpush2.bf16.msra.mxu0 0
    %533 = vmatprep.subr.bf16.mxu0 0
    %534 = vmatpush2.bf16.msra.mxu0 0
    %535 = vmatprep.subr.bf16.mxu0 0
    %536 = vmatpush2.bf16.msra.mxu0 0
    %537 = vmatprep.mubr.bf16.mxu0 0
    %538 = vmatmul.mubr.bf16.gmra.mxu0 %v503
    %v539 = vpop.f32.mrf.mxu0
    %v540 = vadd.f32 %v488, %v539
    %v541 = vpop.f32.mrf.mxu0
    %v542 = vpop.f32.mrf.mxu0
    %v543 = vadd.f32 %v488, %v542
    %v544 = vpop.f32.mrf.mxu0
    %545 = vdwg.mxu0
    %v546 = vmax.f32 %v540, 0.0
    %v547 = vmax.f32 %v543, 0.0
    %v548 = vpack.c.bf16 %v547, %v546
    %v549 = vld [vmem:[#allocation7] sm:$0xf]
    %v550 = vld [vmem:[#allocation7 + $0x4] sm:$0xf]
    %v551 = vld [vmem:[#allocation7 + $0x8] sm:$0xf]
    %v552 = vld [vmem:[#allocation7 + $0xc] sm:$0xf]
    %v553 = vld [vmem:[#allocation8] sm:$0x1]
    %v555 = vlaneseq
    %v556 = vshrl.u32 %v555, 7
    %v557 = vsub.s32 0, %v556
    %v558 = vrot.slane %v553, %v557
    %v564 = vunpack.c.l.b16 %v549
    %v565 = vunpack.c.l.b16 %v550
    %v566 = vunpack.c.l.b16 %v551
    %v567 = vunpack.c.l.b16 %v552
    %v568 = vpack.c.b16 %v565, %v564
    %v569 = vpack.c.b16 %v567, %v566
    %v573 = vsel %vm341, %v548, 0
    %575 = vmatprep.subr.bf16.mxu0 0
    %576 = vmatpush1.bf16.msra.mxu0 0
    %577 = vmatprep.subr.bf16.mxu0 0
    %578 = vmatpush1.bf16.msra.mxu0 0
    %579 = vmatprep.subr.bf16.mxu0 0
    %580 = vmatpush1.bf16.msra.mxu0 0
    %581 = vmatprep.subr.bf16.mxu0 0
    %582 = vmatpush1.bf16.msra.mxu0 0
    %583 = vmatprep.subr.bf16.mxu0 0
    %584 = vmatpush1.bf16.msra.mxu0 0
    %585 = vmatprep.subr.bf16.mxu0 0
    %586 = vmatpush1.bf16.msra.mxu0 0
    %587 = vmatprep.subr.bf16.mxu0 0
    %588 = vmatpush1.bf16.msra.mxu0 %v569
    %589 = vmatprep.subr.bf16.mxu0 0
    %590 = vmatpush1.bf16.msra.mxu0 %v568
    %591 = vmatprep.subr.bf16.mxu0 0
    %592 = vmatpush2.bf16.msra.mxu0 0
    %593 = vmatprep.subr.bf16.mxu0 0
    %594 = vmatpush2.bf16.msra.mxu0 0
    %595 = vmatprep.subr.bf16.mxu0 0
    %596 = vmatpush2.bf16.msra.mxu0 0
    %597 = vmatprep.subr.bf16.mxu0 0
    %598 = vmatpush2.bf16.msra.mxu0 0
    %599 = vmatprep.subr.bf16.mxu0 0
    %600 = vmatpush2.bf16.msra.mxu0 0
    %601 = vmatprep.subr.bf16.mxu0 0
    %602 = vmatpush2.bf16.msra.mxu0 0
    %603 = vmatprep.subr.bf16.mxu0 0
    %604 = vmatpush2.bf16.msra.mxu0 0
    %605 = vmatprep.subr.bf16.mxu0 0
    %606 = vmatpush2.bf16.msra.mxu0 0
    %607 = vmatprep.mubr.bf16.mxu0 0
    %608 = vmatmul.mubr.bf16.gmra.mxu0 %v573
    %v609 = vpop.f32.mrf.mxu0
    %v610 = vadd.f32 %v558, %v609
    %v611 = vpop.f32.mrf.mxu0
    %v612 = vpop.f32.mrf.mxu0
    %v613 = vadd.f32 %v558, %v612
    %v614 = vpop.f32.mrf.mxu0
    %615 = vdwg.mxu0
    %v616 = vmax.f32 %v610, 0.0
    %v617 = vmax.f32 %v613, 0.0
    %v618 = vpack.c.bf16 %v617, %v616
    %619 = vmatprep.subr.bf16.mxu0 0
    %620 = vmatpush1.bf16.msra.mxu0 0
    %621 = vmatprep.subr.bf16.mxu0 0
    %622 = vmatpush1.bf16.msra.mxu0 0
    %623 = vmatprep.subr.bf16.mxu0 0
    %624 = vmatpush1.bf16.msra.mxu0 0
    %625 = vmatprep.subr.bf16.mxu0 0
    %626 = vmatpush1.bf16.msra.mxu0 0
    %627 = vmatprep.subr.bf16.mxu0 0
    %628 = vmatpush1.bf16.msra.mxu0 0
    %629 = vmatprep.subr.bf16.mxu0 0
    %630 = vmatpush1.bf16.msra.mxu0 0
    %631 = vmatprep.subr.bf16.mxu0 0
    %632 = vmatpush1.bf16.msra.mxu0 0
    %633 = vmatprep.subr.bf16.mxu0 0
    %634 = vmatpush1.bf16.msra.mxu0 %v618
    %635 = vmatprep.subr.bf16.mxu0 0
    %636 = vmatpush2.bf16.msra.mxu0 0
    %637 = vmatprep.subr.bf16.mxu0 0
    %638 = vmatpush2.bf16.msra.mxu0 0
    %639 = vmatprep.subr.bf16.mxu0 0
    %640 = vmatpush2.bf16.msra.mxu0 0
    %641 = vmatprep.subr.bf16.mxu0 0
    %642 = vmatpush2.bf16.msra.mxu0 0
    %643 = vmatprep.subr.bf16.mxu0 0
    %644 = vmatpush2.bf16.msra.mxu0 0
    %645 = vmatprep.subr.bf16.mxu0 0
    %646 = vmatpush2.bf16.msra.mxu0 0
    %647 = vmatprep.subr.bf16.mxu0 0
    %648 = vmatpush2.bf16.msra.mxu0 0
    %649 = vmatprep.subr.bf16.mxu0 0
    %650 = vmatpush2.bf16.msra.mxu0 0
    %651 = vmatprep.mubr.bf16.mxu0 0
    %652 = vmatmul.mubr.bf16.gmra.mxu0 %v390
    %v653 = vpop.f32.mrf.mxu0
    %v654 = vadd.f32 0.0, %v653
    %v655 = vpop.f32.mrf.mxu0
    %v656 = vpop.f32.mrf.mxu0
    %v657 = vpop.f32.mrf.mxu0
    %658 = vdwg.mxu0
    %v659 = vpack.c.bf16 %v654, %v654
    %v660 = vld [vmem:[%s15 + $0x10] sm:$0xf]
    %v661 = vld [vmem:[%s15 + $0x14] sm:$0xf]
    %v662 = vld [vmem:[%s15 + $0x18] sm:$0xf]
    %v663 = vld [vmem:[%s15 + $0x1c] sm:$0xf]
    %v668 = vunpack.c.l.b16 %v660
    %v669 = vunpack.c.l.b16 %v661
    %v670 = vunpack.c.l.b16 %v662
    %v671 = vunpack.c.l.b16 %v663
    %v672 = vpack.c.b16 %v669, %v668
    %v673 = vpack.c.b16 %v671, %v670
    %v677 = vsel %vm341, %v659, 0
    %679 = vmatprep.subr.bf16.mxu0 0
    %680 = vmatpush1.bf16.msra.mxu0 0
    %681 = vmatprep.subr.bf16.mxu0 0
    %682 = vmatpush1.bf16.msra.mxu0 0
    %683 = vmatprep.subr.bf16.mxu0 0
    %684 = vmatpush1.bf16.msra.mxu0 0
    %685 = vmatprep.subr.bf16.mxu0 0
    %686 = vmatpush1.bf16.msra.mxu0 0
    %687 = vmatprep.subr.bf16.mxu0 0
    %688 = vmatpush1.bf16.msra.mxu0 0
    %689 = vmatprep.subr.bf16.mxu0 0
    %690 = vmatpush1.bf16.msra.mxu0 0
    %691 = vmatprep.subr.bf16.mxu0 0
    %692 = vmatpush1.bf16.msra.mxu0 %v673
    %693 = vmatprep.subr.bf16.mxu0 0
    %694 = vmatpush1.bf16.msra.mxu0 %v672
    %695 = vmatprep.subr.bf16.mxu0 0
    %696 = vmatpush2.bf16.msra.mxu0 0
    %697 = vmatprep.subr.bf16.mxu0 0
    %698 = vmatpush2.bf16.msra.mxu0 0
    %699 = vmatprep.subr.bf16.mxu0 0
    %700 = vmatpush2.bf16.msra.mxu0 0
    %701 = vmatprep.subr.bf16.mxu0 0
    %702 = vmatpush2.bf16.msra.mxu0 0
    %703 = vmatprep.subr.bf16.mxu0 0
    %704 = vmatpush2.bf16.msra.mxu0 0
    %705 = vmatprep.subr.bf16.mxu0 0
    %706 = vmatpush2.bf16.msra.mxu0 0
    %707 = vmatprep.subr.bf16.mxu0 0
    %708 = vmatpush2.bf16.msra.mxu0 0
    %709 = vmatprep.subr.bf16.mxu0 0
    %710 = vmatpush2.bf16.msra.mxu0 0
    %711 = vmatprep.mubr.bf16.mxu0 0
    %712 = vmatmul.mubr.bf16.gmra.mxu0 %v677
    %v713 = vpop.f32.mrf.mxu0
    %v714 = vadd.f32 0.0, %v713
    %v715 = vpop.f32.mrf.mxu0
    %v716 = vpop.f32.mrf.mxu0
    %v717 = vpop.f32.mrf.mxu0
    %718 = vdwg.mxu0
    %v723 = vunpack.c.l.b16 %v433
    %v724 = vunpack.c.l.b16 %v434
    %v725 = vunpack.c.l.b16 %v435
    %v726 = vunpack.c.l.b16 %v436
    %v727 = vpack.c.b16 %v724, %v723
    %v728 = vpack.c.b16 %v726, %v725
    %v732 = vsel %vm341, %v432, 0
    %734 = vmatprep.subr.bf16.mxu0 0
    %735 = vmatpush1.bf16.msra.mxu0 0
    %736 = vmatprep.subr.bf16.mxu0 0
    %737 = vmatpush1.bf16.msra.mxu0 0
    %738 = vmatprep.subr.bf16.mxu0 0
    %739 = vmatpush1.bf16.msra.mxu0 0
    %740 = vmatprep.subr.bf16.mxu0 0
    %741 = vmatpush1.bf16.msra.mxu0 0
    %742 = vmatprep.subr.bf16.mxu0 0
    %743 = vmatpush1.bf16.msra.mxu0 0
    %744 = vmatprep.subr.bf16.mxu0 0
    %745 = vmatpush1.bf16.msra.mxu0 0
    %746 = vmatprep.subr.bf16.mxu0 0
    %747 = vmatpush1.bf16.msra.mxu0 %v728
    %748 = vmatprep.subr.bf16.mxu0 0
    %749 = vmatpush1.bf16.msra.mxu0 %v727
    %750 = vmatprep.subr.bf16.mxu0 0
    %751 = vmatpush2.bf16.msra.mxu0 0
    %752 = vmatprep.subr.bf16.mxu0 0
    %753 = vmatpush2.bf16.msra.mxu0 0
    %754 = vmatprep.subr.bf16.mxu0 0
    %755 = vmatpush2.bf16.msra.mxu0 0
    %756 = vmatprep.subr.bf16.mxu0 0
    %757 = vmatpush2.bf16.msra.mxu0 0
    %758 = vmatprep.subr.bf16.mxu0 0
    %759 = vmatpush2.bf16.msra.mxu0 0
    %760 = vmatprep.subr.bf16.mxu0 0
    %761 = vmatpush2.bf16.msra.mxu0 0
    %762 = vmatprep.subr.bf16.mxu0 0
    %763 = vmatpush2.bf16.msra.mxu0 0
    %764 = vmatprep.subr.bf16.mxu0 0
    %765 = vmatpush2.bf16.msra.mxu0 0
    %766 = vmatprep.mubr.bf16.mxu0 0
    %767 = vmatmul.mubr.bf16.gmra.mxu0 %v732
    %v768 = vpop.f32.mrf.mxu0
    %v769 = vadd.f32 %v714, %v768
    %v770 = vpop.f32.mrf.mxu0
    %v771 = vpop.f32.mrf.mxu0
    %v772 = vpop.f32.mrf.mxu0
    %773 = vdwg.mxu0
    %774 = vmatprep.subr.bf16.mxu0 0
    %775 = vmatpush1.bf16.msra.mxu0 0
    %776 = vmatprep.subr.bf16.mxu0 0
    %777 = vmatpush1.bf16.msra.mxu0 0
    %778 = vmatprep.subr.bf16.mxu0 0
    %779 = vmatpush1.bf16.msra.mxu0 0
    %780 = vmatprep.subr.bf16.mxu0 0
    %781 = vmatpush1.bf16.msra.mxu0 0
    %782 = vmatprep.subr.bf16.mxu0 0
    %783 = vmatpush1.bf16.msra.mxu0 0
    %784 = vmatprep.subr.bf16.mxu0 0
    %785 = vmatpush1.bf16.msra.mxu0 0
    %786 = vmatprep.subr.bf16.mxu0 0
    %787 = vmatpush1.bf16.msra.mxu0 0
    %788 = vmatprep.subr.bf16.mxu0 0
    %789 = vmatpush1.bf16.msra.mxu0 %v618
    %790 = vmatprep.subr.bf16.mxu0 0
    %791 = vmatpush2.bf16.msra.mxu0 0
    %792 = vmatprep.subr.bf16.mxu0 0
    %793 = vmatpush2.bf16.msra.mxu0 0
    %794 = vmatprep.subr.bf16.mxu0 0
    %795 = vmatpush2.bf16.msra.mxu0 0
    %796 = vmatprep.subr.bf16.mxu0 0
    %797 = vmatpush2.bf16.msra.mxu0 0
    %798 = vmatprep.subr.bf16.mxu0 0
    %799 = vmatpush2.bf16.msra.mxu0 0
    %800 = vmatprep.subr.bf16.mxu0 0
    %801 = vmatpush2.bf16.msra.mxu0 0
    %802 = vmatprep.subr.bf16.mxu0 0
    %803 = vmatpush2.bf16.msra.mxu0 0
    %804 = vmatprep.subr.bf16.mxu0 0
    %805 = vmatpush2.bf16.msra.mxu0 0
    %806 = vmatprep.mubr.bf16.mxu0 0
    %807 = vmatmul.mubr.bf16.gmra.mxu0 %v214
    %v808 = vpop.f32.mrf.mxu0
    %v809 = vadd.f32 %v616, %v808
    %v810 = vpop.f32.mrf.mxu0
    %v811 = vpop.f32.mrf.mxu0
    %v812 = vadd.f32 %v617, %v811
    %v813 = vpop.f32.mrf.mxu0
    %814 = vdwg.mxu0
    %v815 = vpack.c.bf16 %v812, %v809
    %v816 = vld [vmem:[#allocation10] sm:$0xf]
    %v817 = vld [vmem:[#allocation10 + $0x4] sm:$0xf]
    %v818 = vld [vmem:[#allocation10 + $0x8] sm:$0xf]
    %v819 = vld [vmem:[#allocation10 + $0xc] sm:$0xf]
    %v820 = vld [vmem:[#allocation11] sm:$0x1]
    %v822 = vlaneseq
    %v823 = vshrl.u32 %v822, 7
    %v824 = vsub.s32 0, %v823
    %v825 = vrot.slane %v820, %v824
    %v831 = vunpack.c.l.b16 %v816
    %v832 = vunpack.c.l.b16 %v817
    %v833 = vunpack.c.l.b16 %v818
    %v834 = vunpack.c.l.b16 %v819
    %v835 = vpack.c.b16 %v832, %v831
    %v836 = vpack.c.b16 %v834, %v833
    %v840 = vsel %vm341, %v815, 0
    %842 = vmatprep.subr.bf16.mxu0 0
    %843 = vmatpush1.bf16.msra.mxu0 0
    %844 = vmatprep.subr.bf16.mxu0 0
    %845 = vmatpush1.bf16.msra.mxu0 0
    %846 = vmatprep.subr.bf16.mxu0 0
    %847 = vmatpush1.bf16.msra.mxu0 0
    %848 = vmatprep.subr.bf16.mxu0 0
    %849 = vmatpush1.bf16.msra.mxu0 0
    %850 = vmatprep.subr.bf16.mxu0 0
    %851 = vmatpush1.bf16.msra.mxu0 0
    %852 = vmatprep.subr.bf16.mxu0 0
    %853 = vmatpush1.bf16.msra.mxu0 0
    %854 = vmatprep.subr.bf16.mxu0 0
    %855 = vmatpush1.bf16.msra.mxu0 %v836
    %856 = vmatprep.subr.bf16.mxu0 0
    %857 = vmatpush1.bf16.msra.mxu0 %v835
    %858 = vmatprep.subr.bf16.mxu0 0
    %859 = vmatpush2.bf16.msra.mxu0 0
    %860 = vmatprep.subr.bf16.mxu0 0
    %861 = vmatpush2.bf16.msra.mxu0 0
    %862 = vmatprep.subr.bf16.mxu0 0
    %863 = vmatpush2.bf16.msra.mxu0 0
    %864 = vmatprep.subr.bf16.mxu0 0
    %865 = vmatpush2.bf16.msra.mxu0 0
    %866 = vmatprep.subr.bf16.mxu0 0
    %867 = vmatpush2.bf16.msra.mxu0 0
    %868 = vmatprep.subr.bf16.mxu0 0
    %869 = vmatpush2.bf16.msra.mxu0 0
    %870 = vmatprep.subr.bf16.mxu0 0
    %871 = vmatpush2.bf16.msra.mxu0 0
    %872 = vmatprep.subr.bf16.mxu0 0
    %873 = vmatpush2.bf16.msra.mxu0 0
    %874 = vmatprep.mubr.bf16.mxu0 0
    %875 = vmatmul.mubr.bf16.gmra.mxu0 %v840
    %v876 = vpop.f32.mrf.mxu0
    %v877 = vadd.f32 %v825, %v876
    %v878 = vpop.f32.mrf.mxu0
    %v879 = vpop.f32.mrf.mxu0
    %v880 = vadd.f32 %v825, %v879
    %v881 = vpop.f32.mrf.mxu0
    %882 = vdwg.mxu0
    %v883 = vmax.f32 %v877, 0.0
    %v884 = vmax.f32 %v880, 0.0
    %v885 = vpack.c.bf16 %v884, %v883
    %v886 = vld [vmem:[#allocation13] sm:$0xf]
    %v887 = vld [vmem:[#allocation13 + $0x4] sm:$0xf]
    %v888 = vld [vmem:[#allocation13 + $0x8] sm:$0xf]
    %v889 = vld [vmem:[#allocation13 + $0xc] sm:$0xf]
    %v890 = vld [vmem:[#allocation14] sm:$0x1]
    %v892 = vlaneseq
    %v893 = vshrl.u32 %v892, 7
    %v894 = vsub.s32 0, %v893
    %v895 = vrot.slane %v890, %v894
    %v901 = vunpack.c.l.b16 %v886
    %v902 = vunpack.c.l.b16 %v887
    %v903 = vunpack.c.l.b16 %v888
    %v904 = vunpack.c.l.b16 %v889
    %v905 = vpack.c.b16 %v902, %v901
    %v906 = vpack.c.b16 %v904, %v903
    %v910 = vsel %vm341, %v885, 0
    %912 = vmatprep.subr.bf16.mxu0 0
    %913 = vmatpush1.bf16.msra.mxu0 0
    %914 = vmatprep.subr.bf16.mxu0 0
    %915 = vmatpush1.bf16.msra.mxu0 0
    %916 = vmatprep.subr.bf16.mxu0 0
    %917 = vmatpush1.bf16.msra.mxu0 0
    %918 = vmatprep.subr.bf16.mxu0 0
    %919 = vmatpush1.bf16.msra.mxu0 0
    %920 = vmatprep.subr.bf16.mxu0 0
    %921 = vmatpush1.bf16.msra.mxu0 0
    %922 = vmatprep.subr.bf16.mxu0 0
    %923 = vmatpush1.bf16.msra.mxu0 0
    %924 = vmatprep.subr.bf16.mxu0 0
    %925 = vmatpush1.bf16.msra.mxu0 %v906
    %926 = vmatprep.subr.bf16.mxu0 0
    %927 = vmatpush1.bf16.msra.mxu0 %v905
    %928 = vmatprep.subr.bf16.mxu0 0
    %929 = vmatpush2.bf16.msra.mxu0 0
    %930 = vmatprep.subr.bf16.mxu0 0
    %931 = vmatpush2.bf16.msra.mxu0 0
    %932 = vmatprep.subr.bf16.mxu0 0
    %933 = vmatpush2.bf16.msra.mxu0 0
    %934 = vmatprep.subr.bf16.mxu0 0
    %935 = vmatpush2.bf16.msra.mxu0 0
    %936 = vmatprep.subr.bf16.mxu0 0
    %937 = vmatpush2.bf16.msra.mxu0 0
    %938 = vmatprep.subr.bf16.mxu0 0
    %939 = vmatpush2.bf16.msra.mxu0 0
    %940 = vmatprep.subr.bf16.mxu0 0
    %941 = vmatpush2.bf16.msra.mxu0 0
    %942 = vmatprep.subr.bf16.mxu0 0
    %943 = vmatpush2.bf16.msra.mxu0 0
    %944 = vmatprep.mubr.bf16.mxu0 0
    %945 = vmatmul.mubr.bf16.gmra.mxu0 %v910
    %v946 = vpop.f32.mrf.mxu0
    %v947 = vadd.f32 %v895, %v946
    %v948 = vpop.f32.mrf.mxu0
    %v949 = vpop.f32.mrf.mxu0
    %v950 = vadd.f32 %v895, %v949
    %v951 = vpop.f32.mrf.mxu0
    %952 = vdwg.mxu0
    %v953 = vmax.f32 %v947, 0.0
    %v954 = vmax.f32 %v950, 0.0
    %v955 = vpack.c.bf16 %v954, %v953
    %956 = vmatprep.subr.bf16.mxu0 0
    %957 = vmatpush1.bf16.msra.mxu0 0
    %958 = vmatprep.subr.bf16.mxu0 0
    %959 = vmatpush1.bf16.msra.mxu0 0
    %960 = vmatprep.subr.bf16.mxu0 0
    %961 = vmatpush1.bf16.msra.mxu0 0
    %962 = vmatprep.subr.bf16.mxu0 0
    %963 = vmatpush1.bf16.msra.mxu0 0
    %964 = vmatprep.subr.bf16.mxu0 0
    %965 = vmatpush1.bf16.msra.mxu0 0
    %966 = vmatprep.subr.bf16.mxu0 0
    %967 = vmatpush1.bf16.msra.mxu0 0
    %968 = vmatprep.subr.bf16.mxu0 0
    %969 = vmatpush1.bf16.msra.mxu0 0
    %970 = vmatprep.subr.bf16.mxu0 0
    %971 = vmatpush1.bf16.msra.mxu0 %v955
    %972 = vmatprep.subr.bf16.mxu0 0
    %973 = vmatpush2.bf16.msra.mxu0 0
    %974 = vmatprep.subr.bf16.mxu0 0
    %975 = vmatpush2.bf16.msra.mxu0 0
    %976 = vmatprep.subr.bf16.mxu0 0
    %977 = vmatpush2.bf16.msra.mxu0 0
    %978 = vmatprep.subr.bf16.mxu0 0
    %979 = vmatpush2.bf16.msra.mxu0 0
    %980 = vmatprep.subr.bf16.mxu0 0
    %981 = vmatpush2.bf16.msra.mxu0 0
    %982 = vmatprep.subr.bf16.mxu0 0
    %983 = vmatpush2.bf16.msra.mxu0 0
    %984 = vmatprep.subr.bf16.mxu0 0
    %985 = vmatpush2.bf16.msra.mxu0 0
    %986 = vmatprep.subr.bf16.mxu0 0
    %987 = vmatpush2.bf16.msra.mxu0 0
    %988 = vmatprep.mubr.bf16.mxu0 0
    %989 = vmatmul.mubr.bf16.gmra.mxu0 %v390
    %v990 = vpop.f32.mrf.mxu0
    %v991 = vadd.f32 0.0, %v990
    %v992 = vpop.f32.mrf.mxu0
    %v993 = vpop.f32.mrf.mxu0
    %v994 = vpop.f32.mrf.mxu0
    %995 = vdwg.mxu0
    %v996 = vpack.c.bf16 %v991, %v991
    %v997 = vld [vmem:[%s15 + $0x20] sm:$0xf]
    %v998 = vld [vmem:[%s15 + $0x24] sm:$0xf]
    %v999 = vld [vmem:[%s15 + $0x28] sm:$0xf]
    %v1000 = vld [vmem:[%s15 + $0x2c] sm:$0xf]
    %v1005 = vunpack.c.l.b16 %v997
    %v1006 = vunpack.c.l.b16 %v998
    %v1007 = vunpack.c.l.b16 %v999
    %v1008 = vunpack.c.l.b16 %v1000
    %v1009 = vpack.c.b16 %v1006, %v1005
    %v1010 = vpack.c.b16 %v1008, %v1007
    %v1014 = vsel %vm341, %v996, 0
    %1016 = vmatprep.subr.bf16.mxu0 0
    %1017 = vmatpush1.bf16.msra.mxu0 0
    %1018 = vmatprep.subr.bf16.mxu0 0
    %1019 = vmatpush1.bf16.msra.mxu0 0
    %1020 = vmatprep.subr.bf16.mxu0 0
    %1021 = vmatpush1.bf16.msra.mxu0 0
    %1022 = vmatprep.subr.bf16.mxu0 0
    %1023 = vmatpush1.bf16.msra.mxu0 0
    %1024 = vmatprep.subr.bf16.mxu0 0
    %1025 = vmatpush1.bf16.msra.mxu0 0
    %1026 = vmatprep.subr.bf16.mxu0 0
    %1027 = vmatpush1.bf16.msra.mxu0 0
    %1028 = vmatprep.subr.bf16.mxu0 0
    %1029 = vmatpush1.bf16.msra.mxu0 %v1010
    %1030 = vmatprep.subr.bf16.mxu0 0
    %1031 = vmatpush1.bf16.msra.mxu0 %v1009
    %1032 = vmatprep.subr.bf16.mxu0 0
    %1033 = vmatpush2.bf16.msra.mxu0 0
    %1034 = vmatprep.subr.bf16.mxu0 0
    %1035 = vmatpush2.bf16.msra.mxu0 0
    %1036 = vmatprep.subr.bf16.mxu0 0
    %1037 = vmatpush2.bf16.msra.mxu0 0
    %1038 = vmatprep.subr.bf16.mxu0 0
    %1039 = vmatpush2.bf16.msra.mxu0 0
    %1040 = vmatprep.subr.bf16.mxu0 0
    %1041 = vmatpush2.bf16.msra.mxu0 0
    %1042 = vmatprep.subr.bf16.mxu0 0
    %1043 = vmatpush2.bf16.msra.mxu0 0
    %1044 = vmatprep.subr.bf16.mxu0 0
    %1045 = vmatpush2.bf16.msra.mxu0 0
    %1046 = vmatprep.subr.bf16.mxu0 0
    %1047 = vmatpush2.bf16.msra.mxu0 0
    %1048 = vmatprep.mubr.bf16.mxu0 0
    %1049 = vmatmul.mubr.bf16.gmra.mxu0 %v1014
    %v1050 = vpop.f32.mrf.mxu0
    %v1051 = vadd.f32 0.0, %v1050
    %v1052 = vpop.f32.mrf.mxu0
    %v1053 = vpop.f32.mrf.mxu0
    %v1054 = vpop.f32.mrf.mxu0
    %1055 = vdwg.mxu0
    %v1056 = vadd.f32 %v769, %v1051
    %v1057 = vld [vmem:[#allocation16] sm:$0x1]
    %v1059 = vlaneseq
    %v1060 = vshrl.u32 %v1059, 7
    %v1061 = vsub.s32 0, %v1060
    %v1062 = vrot.slane %v1057, %v1061
    %v1064 = vadd.f32 %v1056, %v1062
    %v1065 = vmax.f32 %v1064, 0.0
    %v1066 = vpack.c.bf16 %v1065, %v1065
    %v1067 = vld [vmem:[#allocation17] sm:$0xf]
    %v1068 = vld [vmem:[#allocation17 + $0x4] sm:$0xf]
    %v1069 = vld [vmem:[#allocation17 + $0x8] sm:$0xf]
    %v1070 = vld [vmem:[#allocation17 + $0xc] sm:$0xf]
    %v1071 = vld [vmem:[#allocation17 + $0x10] sm:$0xf]
    %v1072 = vld [vmem:[#allocation17 + $0x14] sm:$0xf]
    %v1073 = vld [vmem:[#allocation17 + $0x18] sm:$0xf]
    %v1074 = vld [vmem:[#allocation17 + $0x1c] sm:$0xf]
    %v1075 = vld [vmem:[#allocation17 + $0x20] sm:$0xf]
    %v1076 = vld [vmem:[#allocation17 + $0x24] sm:$0xf]
    %v1077 = vld [vmem:[#allocation17 + $0x28] sm:$0xf]
    %v1078 = vld [vmem:[#allocation17 + $0x2c] sm:$0xf]
    %v1079 = vld [vmem:[#allocation19] sm:$0x1]
    %v1081 = vlaneseq
    %v1082 = vshrl.u32 %v1081, 7
    %v1083 = vsub.s32 0, %v1082
    %v1084 = vrot.slane %v1079, %v1083
    %v1098 = vunpack.c.l.b16 %v1067
    %v1099 = vunpack.c.l.b16 %v1068
    %v1100 = vunpack.c.l.b16 %v1069
    %v1101 = vunpack.c.l.b16 %v1070
    %v1102 = vunpack.c.l.b16 %v1071
    %v1103 = vunpack.c.l.b16 %v1072
    %v1104 = vunpack.c.l.b16 %v1073
    %v1105 = vunpack.c.l.b16 %v1074
    %v1106 = vunpack.c.l.b16 %v1075
    %v1107 = vunpack.c.l.b16 %v1076
    %v1108 = vunpack.c.l.b16 %v1077
    %v1109 = vunpack.c.l.b16 %v1078
    %v1110 = vpack.c.b16 %v1099, %v1098
    %v1111 = vpack.c.b16 %v1101, %v1100
    %v1112 = vpack.c.b16 %v1103, %v1102
    %v1113 = vpack.c.b16 %v1105, %v1104
    %v1114 = vpack.c.b16 %v1107, %v1106
    %v1115 = vpack.c.b16 %v1109, %v1108
    %vm1122 = vcmask 785408
    %v1124 = vsel %vm1122, %v1066, 0
    %1126 = vmatprep.subr.bf16.mxu0 0
    %1127 = vmatpush1.bf16.msra.mxu0 0
    %1128 = vmatprep.subr.bf16.mxu0 0
    %1129 = vmatpush1.bf16.msra.mxu0 0
    %1130 = vmatprep.subr.bf16.mxu0 0
    %1131 = vmatpush1.bf16.msra.mxu0 %v1115
    %1132 = vmatprep.subr.bf16.mxu0 0
    %1133 = vmatpush1.bf16.msra.mxu0 %v1114
    %1134 = vmatprep.subr.bf16.mxu0 0
    %1135 = vmatpush1.bf16.msra.mxu0 %v1113
    %1136 = vmatprep.subr.bf16.mxu0 0
    %1137 = vmatpush1.bf16.msra.mxu0 %v1112
    %1138 = vmatprep.subr.bf16.mxu0 0
    %1139 = vmatpush1.bf16.msra.mxu0 %v1111
    %1140 = vmatprep.subr.bf16.mxu0 0
    %1141 = vmatpush1.bf16.msra.mxu0 %v1110
    %1142 = vmatprep.subr.bf16.mxu0 0
    %1143 = vmatpush2.bf16.msra.mxu0 0
    %1144 = vmatprep.subr.bf16.mxu0 0
    %1145 = vmatpush2.bf16.msra.mxu0 0
    %1146 = vmatprep.subr.bf16.mxu0 0
    %1147 = vmatpush2.bf16.msra.mxu0 0
    %1148 = vmatprep.subr.bf16.mxu0 0
    %1149 = vmatpush2.bf16.msra.mxu0 0
    %1150 = vmatprep.subr.bf16.mxu0 0
    %1151 = vmatpush2.bf16.msra.mxu0 0
    %1152 = vmatprep.subr.bf16.mxu0 0
    %1153 = vmatpush2.bf16.msra.mxu0 0
    %1154 = vmatprep.subr.bf16.mxu0 0
    %1155 = vmatpush2.bf16.msra.mxu0 0
    %1156 = vmatprep.subr.bf16.mxu0 0
    %1157 = vmatpush2.bf16.msra.mxu0 0
    %1158 = vmatprep.mubr.bf16.mxu0 0
    %1159 = vmatmul.mubr.bf16.gmra.mxu0 %v1124
    %v1160 = vpop.f32.mrf.mxu0
    %v1161 = vadd.f32 %v1084, %v1160
    %v1162 = vpop.f32.mrf.mxu0
    %v1163 = vpop.f32.mrf.mxu0
    %v1164 = vpop.f32.mrf.mxu0
    %1165 = vdwg.mxu0
    %vm1166 = vcmask 779264
    %1167 = vst.msk [vmem:[#allocation20] sm:$0x3] %vm1166, %v1161
    // Predicated region
    $region122: #{simclr_forward.1} parent=1 // pred_check
      _
    $region123: #{simclr_forward.1} parent=1 // pred_check_branch
      %1169 = sbr.rel (0) target = $region125
    $region124: #{simclr_forward.1} parent=1 // pred_region
      %s1171 = ssub.s32 32, 32
      %1172 = vsyncadd [#allocation4], %s1171
      %s1174 = sshll.u32 [#allocation20], 4
      %s1175 = int_to_ptr.vmem [resolvable:$true] %s1174
      %1177 = dma.vmem_to_hbm [thread:$0]  %s1175, 32, %s19, [#allocation4]
    $region125: #{simclr_forward.1} parent=1 // pred_fallthru
      _
    // Predicated region
    $region126: #{simclr_forward.1} parent=1 // pred_check
      _
    $region127: #{simclr_forward.1} parent=1 // pred_check_branch
      %1179 = sbr.rel (0) target = $region129
    $region128: #{simclr_forward.1} parent=1 // pred_region
      %1180 = dma.done [#allocation4], 32
    $region129: #{simclr_forward.1} parent=1 // pred_fallthru
      _
    %1181 = vsyncpa [#allocation3], 1
    %1182 = vsyncpa [#allocation6], 1
    %1183 = vsyncpa [#allocation9], 1
    %1184 = vsyncpa [#allocation12], 1
    %1185 = vsyncpa [#allocation15], 1
    %1186 = vsyncpa [#allocation18], 1
    %1187 = vsyncpa [#allocation4], 1

</llo_original>
